<compile_context>
chip_gen: v7x
topology: tpu7x:2x2x1
jax: 0.10.0
libtpu: 0.0.40
codegen_flags: <defaults>
</compile_context>

<pallas_src>
import functools

import jax
import jax.numpy as jnp
from jax import lax
from jax.experimental import pallas as pl
from jax.experimental.pallas import tpu as pltpu

# ---------------- small synthetic config (consistent with the module structure) ----
B = 2              # videos
T = 4              # frames per video
C_IN = 3           # image channels
H = W = 16         # spatial
K_CONV = 16        # synthetic backbone conv channels
FEATURE_DIM = 128  # stands in for resnet18's 512 (divisible by 4 heads)
NUM_HEADS = 4
HEAD_DIM = FEATURE_DIM // NUM_HEADS
HIDDEN = 256
NUM_CLASSES = 2

ROWS = B * T * (H + 2)          # 144: (frame, padded-row) conv row space
LANES_IN = W * C_IN             # 48:  (x, channel) conv contraction lanes
LANES_CONV = W * K_CONV         # 256: (x, out-channel) conv output lanes
LOGIT_PAD = 128                 # classifier output padded to a full lane width
COMPUTE_DTYPE = jnp.bfloat16    # MXU operand dtype (accumulation is f32)


# ---------------- the single fused kernel -------------------------------------------
def _fused_kernel(*refs, batch, frames, num_heads, head_dim, has_mask):
    it = iter(refs)
    xt_ref = next(it)      # [3, ROWS, LANES_IN]       bf16  y-shifted conv tap views
    wb_ref = next(it)      # [3, LANES_IN, LANES_CONV] bf16  banded conv weights
    cb_ref = next(it)      # [1, LANES_CONV]           f32
    pool_ref = next(it)    # [B*T, ROWS]               bf16  GAP row pool (1/(H*W))
    pjw_ref = next(it)     # [LANES_CONV, D]           bf16  x-sum folded projection
    pjb_ref = next(it)     # [1, D]                    f32
    win_ref = next(it)     # [D, 3D]                   bf16
    bin_ref = next(it)     # [1, 3D]                   f32
    wout_ref = next(it)    # [D, D]                    bf16
    bout_ref = next(it)    # [1, D]                    f32
    bias_ref = next(it)    # [B*T, B*T]                f32   video block-diag bias
    fpool_ref = next(it)   # [B, B*T]                  bf16  frame-mean pool (1/T)
    if has_mask:
        msk_ref = next(it)  # [1, 1]                   f32   SMEM mask-mean scalar
        wv_ref = next(it)   # [D, D]                   bf16
        bv_ref = next(it)   # [1, D]                   f32
    w1_ref = next(it)      # [D, HIDDEN]               bf16
    b1_ref = next(it)      # [1, HIDDEN]               f32
    w2_ref = next(it)      # [HIDDEN, LOGIT_PAD]       bf16
    b2_ref = next(it)      # [1, LOGIT_PAD]            f32
    o_ref = next(it)       # [B, LOGIT_PAD]            f32

    cdt = win_ref.dtype
    f32 = jnp.float32
    d = num_heads * head_dim
    bt = batch * frames

    # ---- backbone: conv3x3 as 3 lane-banded matmuls + ReLU + GAP + projection -----
    conv = (jnp.dot(xt_ref[0], wb_ref[0], preferred_element_type=f32)
            + jnp.dot(xt_ref[1], wb_ref[1], preferred_element_type=f32)
            + jnp.dot(xt_ref[2], wb_ref[2], preferred_element_type=f32)
            + cb_ref[...])                                            # [ROWS, W*K]
    conv = jnp.maximum(conv, 0.0)
    pooled = jnp.dot(pool_ref[...], conv.astype(cdt),
                     preferred_element_type=f32)                      # [B*T, W*K]
    x = jnp.dot(pooled.astype(cdt), pjw_ref[...],
                preferred_element_type=f32) + pjb_ref[...]            # [B*T, D]

    # ---- temporal multi-head self-attention over the T frames of each video -------
    qkv = jnp.dot(x.astype(cdt), win_ref[...],
                  preferred_element_type=f32) + bin_ref[...]          # [B*T, 3D]
    q = qkv[:, :d]
    k = qkv[:, d:2 * d]
    v = qkv[:, 2 * d:]
    w_out = wout_ref[...]
    attn_bias = bias_ref[...]                                         # [B*T, B*T]
    scale = 1.0 / float(head_dim) ** 0.5
    contract_last = (((1,), (1,)), ((), ()))                          # q @ k^T

    attn_out = jnp.zeros((bt, d), f32)
    for hd in range(num_heads):
        sl = slice(hd * head_dim, (hd + 1) * head_dim)
        qh = (q[:, sl] * scale).astype(cdt)
        kh = k[:, sl].astype(cdt)
        vh = v[:, sl].astype(cdt)
        s = lax.dot_general(qh, kh, contract_last,
                            preferred_element_type=f32) + attn_bias
        s = s - jnp.max(s, axis=-1, keepdims=True)
        p = jnp.exp(s)
        p = p * pl.reciprocal(jnp.sum(p, axis=-1, keepdims=True), approx=True)
        oh = jnp.dot(p.astype(cdt), vh, preferred_element_type=f32)
        # concat-of-heads @ W_out  ==  sum_h head_h @ W_out[h*hd:(h+1)*hd, :]
        attn_out = attn_out + jnp.dot(oh.astype(cdt), w_out[sl, :],
                                      preferred_element_type=f32)
    attn_out = attn_out + bout_ref[...]                               # [B*T, D]

    # features.mean(dim=1): per-video frame mean via precomputed block-diag pool
    feats = jnp.dot(fpool_ref[...], attn_out.astype(cdt),
                    preferred_element_type=f32)                       # [B, D]

    if has_mask:
        # mask_strength = face_mask.mean().item() (scalar, computed in wrapper).
        # ContextAttention over a length-1 sequence: the softmax of the single
        # score is identically 1, so attended == value(context_features); the
        # query/key projections cannot influence the output and are skipped.
        m = msk_ref[0, 0]
        ctx = feats * (1.0 - m)
        attended = jnp.dot(ctx.astype(cdt), wv_ref[...],
                           preferred_element_type=f32) + bv_ref[...]
        feats = feats + attended

    # classifier: Linear -> ReLU -> Dropout(identity, eval) -> Linear (lane-padded)
    hid = jnp.maximum(jnp.dot(feats.astype(cdt), w1_ref[...],
                              preferred_element_type=f32) + b1_ref[...], 0.0)
    o_ref[...] = jnp.dot(hid.astype(cdt), w2_ref[...],
                         preferred_element_type=f32) + b2_ref[...]


def _full_spec(shape):
    rank = len(shape)
    return pl.BlockSpec(tuple(shape), lambda i: (0,) * rank)


def fused_forward(x_taps, mask_mean, prep, batch, frames):
    has_mask = mask_mean is not None
    kern = functools.partial(_fused_kernel, batch=batch, frames=frames,
                             num_heads=NUM_HEADS, head_dim=HEAD_DIM,
                             has_mask=has_mask)

    names = ["conv_wb", "conv_bb", "pool_rows", "proj_big", "proj_b",
             "mha_win", "mha_bin", "mha_wout", "mha_bout",
             "attn_bias", "fpool"]
    args = [x_taps] + [prep[nm] for nm in names]
    specs = [_full_spec(a.shape) for a in args]
    if has_mask:
        args += [mask_mean, prep["ctx_wv"], prep["ctx_bv"]]
        specs += [pl.BlockSpec(memory_space=pltpu.MemorySpace.SMEM),
                  _full_spec(prep["ctx_wv"].shape),
                  _full_spec(prep["ctx_bv"].shape)]
    tail = ["cls_w1", "cls_b1", "cls_w2p", "cls_b2p"]
    args += [prep[nm] for nm in tail]
    specs += [_full_spec(prep[nm].shape) for nm in tail]

    return pl.pallas_call(
        kern,
        out_shape=jax.ShapeDtypeStruct((batch, LOGIT_PAD), jnp.float32),
        grid=(1,),
        in_specs=specs,
        out_specs=_full_spec((batch, LOGIT_PAD)),
        compiler_params=pltpu.CompilerParams(dimension_semantics=("arbitrary",)),
    )(*args)


# ---------------- parameters (deterministic synthetic init) ------------------------
def init_params(key):
    keys = jax.random.split(key, 9)

    def dense(k, shape, scale=0.02):
        return (scale * jax.random.normal(k, shape)).astype(jnp.float32)

    return dict(
        conv_w=dense(keys[0], (9 * C_IN, K_CONV)),
        conv_b=jnp.zeros((1, K_CONV), jnp.float32),
        proj_w=dense(keys[1], (K_CONV, FEATURE_DIM)),
        proj_b=jnp.zeros((1, FEATURE_DIM), jnp.float32),
        mha_win=dense(keys[2], (FEATURE_DIM, 3 * FEATURE_DIM)),
        mha_bin=jnp.zeros((1, 3 * FEATURE_DIM), jnp.float32),
        mha_wout=dense(keys[3], (FEATURE_DIM, FEATURE_DIM)),
        mha_bout=jnp.zeros((1, FEATURE_DIM), jnp.float32),
        # query/key of ContextAttention are mathematically inert here (seq length 1)
        ctx_wq=dense(keys[4], (FEATURE_DIM, FEATURE_DIM)),
        ctx_bq=jnp.zeros((1, FEATURE_DIM), jnp.float32),
        ctx_wk=dense(keys[5], (FEATURE_DIM, FEATURE_DIM)),
        ctx_bk=jnp.zeros((1, FEATURE_DIM), jnp.float32),
        ctx_wv=dense(keys[6], (FEATURE_DIM, FEATURE_DIM)),
        ctx_bv=jnp.zeros((1, FEATURE_DIM), jnp.float32),
        cls_w1=dense(keys[7], (FEATURE_DIM, HIDDEN)),
        cls_b1=jnp.zeros((1, HIDDEN), jnp.float32),
        cls_w2=dense(keys[8], (HIDDEN, NUM_CLASSES)),
        cls_b2=jnp.zeros((1, NUM_CLASSES), jnp.float32),
    )


def prepare_params(params):
    """Precompute banded conv weights, block-diagonal pools/bias, bf16 MXU operands."""
    cdt = COMPUTE_DTYPE
    f32 = jnp.float32

    # Banded conv weights: fold the 3x3 x-window (and its zero padding) into three
    # [W*C, W*K] matrices, one per y-tap:
    #   wb[dy][x_in*C + c, x_out*K + k] = conv_w[(dy*3 + dx)*C + c, k],  dx = x_in-x_out+1
    cw = params["conv_w"].reshape(3, 3, C_IN, K_CONV)            # [dy, dx, c, k]
    x_in = jnp.arange(W)[:, None]
    x_out = jnp.arange(W)[None, :]
    dx = x_in - x_out + 1                                        # [W, W]
    valid = ((dx >= 0) & (dx <= 2)).astype(f32)
    band = cw[:, jnp.clip(dx, 0, 2)] * valid[None, :, :, None, None]   # [3,W,W,C,K]
    conv_wb = band.transpose(0, 1, 3, 2, 4).reshape(3, LANES_IN, LANES_CONV)
    conv_bb = jnp.tile(params["conv_b"], (1, W))                 # [1, W*K]

    # GAP row pool over the (frame, padded-row) space; pad rows get weight 0.
    r = jnp.arange(ROWS)
    frame_of_row = r // (H + 2)
    row_in_frame = r % (H + 2)
    pool_rows = ((frame_of_row[None, :] == jnp.arange(B * T)[:, None])
                 & (row_in_frame[None, :] >= 1)
                 & (row_in_frame[None, :] <= H)).astype(f32) / float(H * W)

    # Fold the GAP x-sum into the K -> FEATURE_DIM projection weight.
    proj_big = jnp.tile(params["proj_w"], (W, 1))                # [W*K, D]

    # Video block-diagonal additive attention bias and per-video frame-mean pool.
    vid = jnp.arange(B * T) // T
    attn_bias = jnp.where(vid[:, None] == vid[None, :], 0.0, -1e30).astype(f32)
    fpool = (vid[None, :] == jnp.arange(B)[:, None]).astype(f32) / float(T)

    return dict(
        conv_wb=conv_wb.astype(cdt),
        conv_bb=conv_bb.astype(f32),
        pool_rows=pool_rows.astype(cdt),          # 1/256 is exact in bf16
        proj_big=proj_big.astype(cdt),
        proj_b=params["proj_b"],
        mha_win=params["mha_win"].astype(cdt),
        mha_bin=params["mha_bin"],
        mha_wout=params["mha_wout"].astype(cdt),
        mha_bout=params["mha_bout"],
        attn_bias=attn_bias,
        fpool=fpool.astype(cdt),                  # 1/T = 0.25 exact in bf16
        ctx_wv=params["ctx_wv"].astype(cdt),
        ctx_bv=params["ctx_bv"],
        cls_w1=params["cls_w1"].astype(cdt),
        cls_b1=params["cls_b1"],
        cls_w2p=jnp.pad(params["cls_w2"],
                        ((0, 0), (0, LOGIT_PAD - NUM_CLASSES))).astype(cdt),
        cls_b2p=jnp.pad(params["cls_b2"], ((0, 0), (0, LOGIT_PAD - NUM_CLASSES))),
    )


# ---------------- full forward (mirrors FairDeepfakeDetector.forward, 5-D path) ----
def fair_deepfake_detector_forward(prep, x, face_mask=None):
    """x: [B, T, C, H, W] (NCHW frames); face_mask: [B, T, H, W] or None."""
    batch_size, num_frames = x.shape[0], x.shape[1]
    n = batch_size * num_frames
    c, h, w = x.shape[2], x.shape[3], x.shape[4]

    # Light-weight layout prep: NCHW -> (frame*padded_row, x*channel) slab plus its
    # three y-shifted tap views (the zero rows stand in for the conv y-padding).
    frames = x.reshape(n, c, h, w)
    nhwc = jnp.transpose(frames, (0, 2, 3, 1))                   # [N, H, W, C]
    x2d = nhwc.reshape(n, h, w * c)
    xin = jnp.pad(x2d, ((0, 0), (1, 1), (0, 0))).reshape(n * (h + 2), w * c)
    xext = jnp.pad(xin, ((1, 1), (0, 0)))                        # [N*(H+2)+2, W*C]
    rows = n * (h + 2)
    x_taps = jnp.stack([xext[dyt:dyt + rows] for dyt in range(3)],
                       axis=0).astype(COMPUTE_DTYPE)             # [3, ROWS, W*C]

    if face_mask is not None:
        mask_mean = jnp.mean(face_mask).reshape(1, 1).astype(jnp.float32)
    else:
        mask_mean = None

    logits_padded = fused_forward(x_taps, mask_mean, prep, batch_size, num_frames)
    return logits_padded[:, :NUM_CLASSES]


if __name__ == "__main__":
    key = jax.random.PRNGKey(0)
    pkey, xkey, mkey = jax.random.split(key, 3)
    params = init_params(pkey)
    prep = prepare_params(params)
    x = jax.random.normal(xkey, (B, T, C_IN, H, W), dtype=jnp.float32)
    face_mask = jax.random.uniform(mkey, (B, T, H, W), dtype=jnp.float32)

    fwd = jax.jit(fair_deepfake_detector_forward)
    logits = fwd(prep, x, face_mask)
    jax.block_until_ready(logits)
    assert logits.shape == (B, NUM_CLASSES)
    assert bool(jnp.all(jnp.isfinite(logits)))

    # also exercise the face_mask=None path
    fwd_nm = jax.jit(lambda p, xx: fair_deepfake_detector_forward(p, xx, None))
    logits_nm = fwd_nm(prep, x)
    jax.block_until_ready(logits_nm)
    assert logits_nm.shape == (B, NUM_CLASSES)
    assert bool(jnp.all(jnp.isfinite(logits_nm)))

    print("KERNEL_OK")
</pallas_src>

<mosaic_0001>
module attributes {stable_mosaic.version = 11 : i64} {
  func.func @_fused_kernel(%arg0: i32, %arg1: memref<3x144x48xbf16, #tpu.memory_space<vmem>>, %arg2: memref<3x48x256xbf16, #tpu.memory_space<vmem>>, %arg3: memref<1x256xf32, #tpu.memory_space<vmem>>, %arg4: memref<8x144xbf16, #tpu.memory_space<vmem>>, %arg5: memref<256x128xbf16, #tpu.memory_space<vmem>>, %arg6: memref<1x128xf32, #tpu.memory_space<vmem>>, %arg7: memref<128x384xbf16, #tpu.memory_space<vmem>>, %arg8: memref<1x384xf32, #tpu.memory_space<vmem>>, %arg9: memref<128x128xbf16, #tpu.memory_space<vmem>>, %arg10: memref<1x128xf32, #tpu.memory_space<vmem>>, %arg11: memref<8x8xf32, #tpu.memory_space<vmem>>, %arg12: memref<2x8xbf16, #tpu.memory_space<vmem>>, %arg13: memref<1x1xf32, #tpu.memory_space<smem>>, %arg14: memref<128x128xbf16, #tpu.memory_space<vmem>>, %arg15: memref<1x128xf32, #tpu.memory_space<vmem>>, %arg16: memref<128x256xbf16, #tpu.memory_space<vmem>>, %arg17: memref<1x256xf32, #tpu.memory_space<vmem>>, %arg18: memref<256x128xbf16, #tpu.memory_space<vmem>>, %arg19: memref<1x128xf32, #tpu.memory_space<vmem>>, %arg20: memref<2x128xf32, #tpu.memory_space<vmem>>) attributes {dimension_semantics = [#tpu.dimension_semantics<arbitrary>], iteration_bounds = array<i64: 1>, scalar_prefetch = 0 : i64, scratch_operands = 0 : i64, tpu.core_type = #tpu.core_type<tc>, window_params = [{pipeline_mode = #tpu.pipeline_mode<synchronous>, transform_indices = @transform_0, window_bounds = array<i64: 3, 144, 48>}, {pipeline_mode = #tpu.pipeline_mode<synchronous>, transform_indices = @transform_1, window_bounds = array<i64: 3, 48, 256>}, {pipeline_mode = #tpu.pipeline_mode<synchronous>, transform_indices = @transform_2, window_bounds = array<i64: 1, 256>}, {pipeline_mode = #tpu.pipeline_mode<synchronous>, transform_indices = @transform_3, window_bounds = array<i64: 8, 144>}, {pipeline_mode = #tpu.pipeline_mode<synchronous>, transform_indices = @transform_4, window_bounds = array<i64: 256, 128>}, {pipeline_mode = #tpu.pipeline_mode<synchronous>, transform_indices = @transform_5, window_bounds = array<i64: 1, 128>}, {pipeline_mode = #tpu.pipeline_mode<synchronous>, transform_indices = @transform_6, window_bounds = array<i64: 128, 384>}, {pipeline_mode = #tpu.pipeline_mode<synchronous>, transform_indices = @transform_7, window_bounds = array<i64: 1, 384>}, {pipeline_mode = #tpu.pipeline_mode<synchronous>, transform_indices = @transform_8, window_bounds = array<i64: 128, 128>}, {pipeline_mode = #tpu.pipeline_mode<synchronous>, transform_indices = @transform_9, window_bounds = array<i64: 1, 128>}, {pipeline_mode = #tpu.pipeline_mode<synchronous>, transform_indices = @transform_10, window_bounds = array<i64: 8, 8>}, {pipeline_mode = #tpu.pipeline_mode<synchronous>, transform_indices = @transform_11, window_bounds = array<i64: 2, 8>}, {transform_indices = @transform_12, window_bounds = array<i64: 1, 1>}, {pipeline_mode = #tpu.pipeline_mode<synchronous>, transform_indices = @transform_13, window_bounds = array<i64: 128, 128>}, {pipeline_mode = #tpu.pipeline_mode<synchronous>, transform_indices = @transform_14, window_bounds = array<i64: 1, 128>}, {pipeline_mode = #tpu.pipeline_mode<synchronous>, transform_indices = @transform_15, window_bounds = array<i64: 128, 256>}, {pipeline_mode = #tpu.pipeline_mode<synchronous>, transform_indices = @transform_16, window_bounds = array<i64: 1, 256>}, {pipeline_mode = #tpu.pipeline_mode<synchronous>, transform_indices = @transform_17, window_bounds = array<i64: 256, 128>}, {pipeline_mode = #tpu.pipeline_mode<synchronous>, transform_indices = @transform_18, window_bounds = array<i64: 1, 128>}, {pipeline_mode = #tpu.pipeline_mode<synchronous>, transform_indices = @transform_19, window_bounds = array<i64: 2, 128>}]} {
    %c0 = arith.constant 0 : index
    %c0_0 = arith.constant 0 : index
    %c0_1 = arith.constant 0 : index
    %0 = vector.load %arg1[%c0, %c0_0, %c0_1] : memref<3x144x48xbf16, #tpu.memory_space<vmem>>, vector<1x144x48xbf16>
    %1 = vector.shape_cast %0 : vector<1x144x48xbf16> to vector<144x48xbf16>
    %c0_2 = arith.constant 0 : index
    %c0_3 = arith.constant 0 : index
    %c0_4 = arith.constant 0 : index
    %2 = vector.load %arg2[%c0_2, %c0_3, %c0_4] : memref<3x48x256xbf16, #tpu.memory_space<vmem>>, vector<1x48x256xbf16>
    %3 = vector.shape_cast %2 : vector<1x48x256xbf16> to vector<48x256xbf16>
    %cst = arith.constant dense<0.000000e+00> : vector<144x256xf32>
    %4 = tpu.matmul %1, %3, %cst {dimension_numbers = #tpu.dot_dimension_numbers<[1], [0], [0], [1], [0, 0, 1, 1], [], []>} : vector<144x48xbf16>, vector<48x256xbf16>, vector<144x256xf32> -> vector<144x256xf32>
    %c1 = arith.constant 1 : index
    %c0_5 = arith.constant 0 : index
    %c0_6 = arith.constant 0 : index
    %5 = vector.load %arg1[%c1, %c0_5, %c0_6] : memref<3x144x48xbf16, #tpu.memory_space<vmem>>, vector<1x144x48xbf16>
    %6 = vector.shape_cast %5 : vector<1x144x48xbf16> to vector<144x48xbf16>
    %c1_7 = arith.constant 1 : index
    %c0_8 = arith.constant 0 : index
    %c0_9 = arith.constant 0 : index
    %7 = vector.load %arg2[%c1_7, %c0_8, %c0_9] : memref<3x48x256xbf16, #tpu.memory_space<vmem>>, vector<1x48x256xbf16>
    %8 = vector.shape_cast %7 : vector<1x48x256xbf16> to vector<48x256xbf16>
    %cst_10 = arith.constant dense<0.000000e+00> : vector<144x256xf32>
    %9 = tpu.matmul %6, %8, %cst_10 {dimension_numbers = #tpu.dot_dimension_numbers<[1], [0], [0], [1], [0, 0, 1, 1], [], []>} : vector<144x48xbf16>, vector<48x256xbf16>, vector<144x256xf32> -> vector<144x256xf32>
    %10 = arith.addf %4, %9 : vector<144x256xf32>
    %c2 = arith.constant 2 : index
    %c0_11 = arith.constant 0 : index
    %c0_12 = arith.constant 0 : index
    %11 = vector.load %arg1[%c2, %c0_11, %c0_12] : memref<3x144x48xbf16, #tpu.memory_space<vmem>>, vector<1x144x48xbf16>
    %12 = vector.shape_cast %11 : vector<1x144x48xbf16> to vector<144x48xbf16>
    %c2_13 = arith.constant 2 : index
    %c0_14 = arith.constant 0 : index
    %c0_15 = arith.constant 0 : index
    %13 = vector.load %arg2[%c2_13, %c0_14, %c0_15] : memref<3x48x256xbf16, #tpu.memory_space<vmem>>, vector<1x48x256xbf16>
    %14 = vector.shape_cast %13 : vector<1x48x256xbf16> to vector<48x256xbf16>
    %cst_16 = arith.constant dense<0.000000e+00> : vector<144x256xf32>
    %15 = tpu.matmul %12, %14, %cst_16 {dimension_numbers = #tpu.dot_dimension_numbers<[1], [0], [0], [1], [0, 0, 1, 1], [], []>} : vector<144x48xbf16>, vector<48x256xbf16>, vector<144x256xf32> -> vector<144x256xf32>
    %16 = arith.addf %10, %15 : vector<144x256xf32>
    %c0_17 = arith.constant 0 : index
    %c0_18 = arith.constant 0 : index
    %17 = vector.load %arg3[%c0_17, %c0_18] : memref<1x256xf32, #tpu.memory_space<vmem>>, vector<1x256xf32>
    %18 = vector.broadcast %17 : vector<1x256xf32> to vector<144x256xf32>
    %19 = arith.addf %16, %18 : vector<144x256xf32>
    %cst_19 = arith.constant 0.000000e+00 : f32
    %20 = vector.broadcast %cst_19 : f32 to vector<144x256xf32>
    %21 = arith.maximumf %19, %20 : vector<144x256xf32>
    %c0_20 = arith.constant 0 : index
    %c0_21 = arith.constant 0 : index
    %22 = vector.load %arg4[%c0_20, %c0_21] : memref<8x144xbf16, #tpu.memory_space<vmem>>, vector<8x144xbf16>
    %23 = arith.truncf %21 : vector<144x256xf32> to vector<144x256xbf16>
    %cst_22 = arith.constant dense<0.000000e+00> : vector<8x256xf32>
    %24 = tpu.matmul %22, %23, %cst_22 {dimension_numbers = #tpu.dot_dimension_numbers<[1], [0], [0], [1], [0, 0, 1, 1], [], []>} : vector<8x144xbf16>, vector<144x256xbf16>, vector<8x256xf32> -> vector<8x256xf32>
    %25 = arith.truncf %24 : vector<8x256xf32> to vector<8x256xbf16>
    %c0_23 = arith.constant 0 : index
    %c0_24 = arith.constant 0 : index
    %26 = vector.load %arg5[%c0_23, %c0_24] : memref<256x128xbf16, #tpu.memory_space<vmem>>, vector<256x128xbf16>
    %cst_25 = arith.constant dense<0.000000e+00> : vector<8x128xf32>
    %27 = tpu.matmul %25, %26, %cst_25 {dimension_numbers = #tpu.dot_dimension_numbers<[1], [0], [0], [1], [0, 0, 1, 1], [], []>} : vector<8x256xbf16>, vector<256x128xbf16>, vector<8x128xf32> -> vector<8x128xf32>
    %c0_26 = arith.constant 0 : index
    %c0_27 = arith.constant 0 : index
    %28 = vector.load %arg6[%c0_26, %c0_27] : memref<1x128xf32, #tpu.memory_space<vmem>>, vector<1x128xf32>
    %29 = vector.broadcast %28 : vector<1x128xf32> to vector<8x128xf32>
    %30 = arith.addf %27, %29 : vector<8x128xf32>
    %31 = arith.truncf %30 : vector<8x128xf32> to vector<8x128xbf16>
    %c0_28 = arith.constant 0 : index
    %c0_29 = arith.constant 0 : index
    %32 = vector.load %arg7[%c0_28, %c0_29] : memref<128x384xbf16, #tpu.memory_space<vmem>>, vector<128x384xbf16>
    %cst_30 = arith.constant dense<0.000000e+00> : vector<8x384xf32>
    %33 = tpu.matmul %31, %32, %cst_30 {dimension_numbers = #tpu.dot_dimension_numbers<[1], [0], [0], [1], [0, 0, 1, 1], [], []>} : vector<8x128xbf16>, vector<128x384xbf16>, vector<8x384xf32> -> vector<8x384xf32>
    %c0_31 = arith.constant 0 : index
    %c0_32 = arith.constant 0 : index
    %34 = vector.load %arg8[%c0_31, %c0_32] : memref<1x384xf32, #tpu.memory_space<vmem>>, vector<1x384xf32>
    %35 = vector.broadcast %34 : vector<1x384xf32> to vector<8x384xf32>
    %36 = arith.addf %33, %35 : vector<8x384xf32>
    %37 = vector.extract_strided_slice %36 {offsets = [0, 0], sizes = [8, 128], strides = [1, 1]} : vector<8x384xf32> to vector<8x128xf32>
    %38 = vector.extract_strided_slice %36 {offsets = [0, 128], sizes = [8, 128], strides = [1, 1]} : vector<8x384xf32> to vector<8x128xf32>
    %39 = vector.extract_strided_slice %36 {offsets = [0, 256], sizes = [8, 128], strides = [1, 1]} : vector<8x384xf32> to vector<8x128xf32>
    %c0_33 = arith.constant 0 : index
    %c0_34 = arith.constant 0 : index
    %40 = vector.load %arg9[%c0_33, %c0_34] : memref<128x128xbf16, #tpu.memory_space<vmem>>, vector<128x128xbf16>
    %c0_35 = arith.constant 0 : index
    %c0_36 = arith.constant 0 : index
    %41 = vector.load %arg11[%c0_35, %c0_36] : memref<8x8xf32, #tpu.memory_space<vmem>>, vector<8x8xf32>
    %cst_37 = arith.constant 0.000000e+00 : f32
    %42 = vector.broadcast %cst_37 : f32 to vector<8x128xf32>
    %43 = vector.extract_strided_slice %37 {offsets = [0, 0], sizes = [8, 32], strides = [1, 1]} : vector<8x128xf32> to vector<8x32xf32>
    %cst_38 = arith.constant 0.176776692 : f32
    %44 = vector.broadcast %cst_38 : f32 to vector<8x32xf32>
    %45 = arith.mulf %43, %44 : vector<8x32xf32>
    %46 = arith.truncf %45 : vector<8x32xf32> to vector<8x32xbf16>
    %47 = vector.extract_strided_slice %38 {offsets = [0, 0], sizes = [8, 32], strides = [1, 1]} : vector<8x128xf32> to vector<8x32xf32>
    %48 = arith.truncf %47 : vector<8x32xf32> to vector<8x32xbf16>
    %49 = vector.extract_strided_slice %39 {offsets = [0, 0], sizes = [8, 32], strides = [1, 1]} : vector<8x128xf32> to vector<8x32xf32>
    %50 = arith.truncf %49 : vector<8x32xf32> to vector<8x32xbf16>
    %cst_39 = arith.constant dense<0.000000e+00> : vector<8x8xf32>
    %51 = tpu.matmul %46, %48, %cst_39 {dimension_numbers = #tpu.dot_dimension_numbers<[1], [1], [0], [0], [0, 0, 1, 0], [], []>} : vector<8x32xbf16>, vector<8x32xbf16>, vector<8x8xf32> -> vector<8x8xf32>
    %52 = arith.addf %51, %41 : vector<8x8xf32>
    %cst_40 = arith.constant dense<0xFF800000> : vector<8xf32>
    %53 = vector.multi_reduction <maximumf>, %52, %cst_40 [1] : vector<8x8xf32> to vector<8xf32>
    %54 = vector.shape_cast %53 : vector<8xf32> to vector<8x1xf32>
    %55 = vector.broadcast %54 : vector<8x1xf32> to vector<8x8xf32>
    %56 = arith.subf %52, %55 : vector<8x8xf32>
    %57 = math.exp %56 : vector<8x8xf32>
    %cst_41 = arith.constant dense<0.000000e+00> : vector<8xf32>
    %58 = vector.multi_reduction <add>, %57, %cst_41 [1] : vector<8x8xf32> to vector<8xf32>
    %59 = vector.shape_cast %58 : vector<8xf32> to vector<8x1xf32>
    %60 = tpu.reciprocal %59 {approx = true} : vector<8x1xf32> -> vector<8x1xf32>
    %61 = vector.broadcast %60 : vector<8x1xf32> to vector<8x8xf32>
    %62 = arith.mulf %57, %61 : vector<8x8xf32>
    %63 = arith.truncf %62 : vector<8x8xf32> to vector<8x8xbf16>
    %cst_42 = arith.constant dense<0.000000e+00> : vector<8x32xf32>
    %64 = tpu.matmul %63, %50, %cst_42 {dimension_numbers = #tpu.dot_dimension_numbers<[1], [0], [0], [1], [0, 0, 1, 1], [], []>} : vector<8x8xbf16>, vector<8x32xbf16>, vector<8x32xf32> -> vector<8x32xf32>
    %65 = arith.truncf %64 : vector<8x32xf32> to vector<8x32xbf16>
    %66 = vector.extract_strided_slice %40 {offsets = [0, 0], sizes = [32, 128], strides = [1, 1]} : vector<128x128xbf16> to vector<32x128xbf16>
    %cst_43 = arith.constant dense<0.000000e+00> : vector<8x128xf32>
    %67 = tpu.matmul %65, %66, %cst_43 {dimension_numbers = #tpu.dot_dimension_numbers<[1], [0], [0], [1], [0, 0, 1, 1], [], []>} : vector<8x32xbf16>, vector<32x128xbf16>, vector<8x128xf32> -> vector<8x128xf32>
    %68 = arith.addf %42, %67 : vector<8x128xf32>
    %69 = vector.extract_strided_slice %37 {offsets = [0, 32], sizes = [8, 32], strides = [1, 1]} : vector<8x128xf32> to vector<8x32xf32>
    %cst_44 = arith.constant 0.176776692 : f32
    %70 = vector.broadcast %cst_44 : f32 to vector<8x32xf32>
    %71 = arith.mulf %69, %70 : vector<8x32xf32>
    %72 = arith.truncf %71 : vector<8x32xf32> to vector<8x32xbf16>
    %73 = vector.extract_strided_slice %38 {offsets = [0, 32], sizes = [8, 32], strides = [1, 1]} : vector<8x128xf32> to vector<8x32xf32>
    %74 = arith.truncf %73 : vector<8x32xf32> to vector<8x32xbf16>
    %75 = vector.extract_strided_slice %39 {offsets = [0, 32], sizes = [8, 32], strides = [1, 1]} : vector<8x128xf32> to vector<8x32xf32>
    %76 = arith.truncf %75 : vector<8x32xf32> to vector<8x32xbf16>
    %cst_45 = arith.constant dense<0.000000e+00> : vector<8x8xf32>
    %77 = tpu.matmul %72, %74, %cst_45 {dimension_numbers = #tpu.dot_dimension_numbers<[1], [1], [0], [0], [0, 0, 1, 0], [], []>} : vector<8x32xbf16>, vector<8x32xbf16>, vector<8x8xf32> -> vector<8x8xf32>
    %78 = arith.addf %77, %41 : vector<8x8xf32>
    %cst_46 = arith.constant dense<0xFF800000> : vector<8xf32>
    %79 = vector.multi_reduction <maximumf>, %78, %cst_46 [1] : vector<8x8xf32> to vector<8xf32>
    %80 = vector.shape_cast %79 : vector<8xf32> to vector<8x1xf32>
    %81 = vector.broadcast %80 : vector<8x1xf32> to vector<8x8xf32>
    %82 = arith.subf %78, %81 : vector<8x8xf32>
    %83 = math.exp %82 : vector<8x8xf32>
    %cst_47 = arith.constant dense<0.000000e+00> : vector<8xf32>
    %84 = vector.multi_reduction <add>, %83, %cst_47 [1] : vector<8x8xf32> to vector<8xf32>
    %85 = vector.shape_cast %84 : vector<8xf32> to vector<8x1xf32>
    %86 = tpu.reciprocal %85 {approx = true} : vector<8x1xf32> -> vector<8x1xf32>
    %87 = vector.broadcast %86 : vector<8x1xf32> to vector<8x8xf32>
    %88 = arith.mulf %83, %87 : vector<8x8xf32>
    %89 = arith.truncf %88 : vector<8x8xf32> to vector<8x8xbf16>
    %cst_48 = arith.constant dense<0.000000e+00> : vector<8x32xf32>
    %90 = tpu.matmul %89, %76, %cst_48 {dimension_numbers = #tpu.dot_dimension_numbers<[1], [0], [0], [1], [0, 0, 1, 1], [], []>} : vector<8x8xbf16>, vector<8x32xbf16>, vector<8x32xf32> -> vector<8x32xf32>
    %91 = arith.truncf %90 : vector<8x32xf32> to vector<8x32xbf16>
    %92 = vector.extract_strided_slice %40 {offsets = [32, 0], sizes = [32, 128], strides = [1, 1]} : vector<128x128xbf16> to vector<32x128xbf16>
    %cst_49 = arith.constant dense<0.000000e+00> : vector<8x128xf32>
    %93 = tpu.matmul %91, %92, %cst_49 {dimension_numbers = #tpu.dot_dimension_numbers<[1], [0], [0], [1], [0, 0, 1, 1], [], []>} : vector<8x32xbf16>, vector<32x128xbf16>, vector<8x128xf32> -> vector<8x128xf32>
    %94 = arith.addf %68, %93 : vector<8x128xf32>
    %95 = vector.extract_strided_slice %37 {offsets = [0, 64], sizes = [8, 32], strides = [1, 1]} : vector<8x128xf32> to vector<8x32xf32>
    %cst_50 = arith.constant 0.176776692 : f32
    %96 = vector.broadcast %cst_50 : f32 to vector<8x32xf32>
    %97 = arith.mulf %95, %96 : vector<8x32xf32>
    %98 = arith.truncf %97 : vector<8x32xf32> to vector<8x32xbf16>
    %99 = vector.extract_strided_slice %38 {offsets = [0, 64], sizes = [8, 32], strides = [1, 1]} : vector<8x128xf32> to vector<8x32xf32>
    %100 = arith.truncf %99 : vector<8x32xf32> to vector<8x32xbf16>
    %101 = vector.extract_strided_slice %39 {offsets = [0, 64], sizes = [8, 32], strides = [1, 1]} : vector<8x128xf32> to vector<8x32xf32>
    %102 = arith.truncf %101 : vector<8x32xf32> to vector<8x32xbf16>
    %cst_51 = arith.constant dense<0.000000e+00> : vector<8x8xf32>
    %103 = tpu.matmul %98, %100, %cst_51 {dimension_numbers = #tpu.dot_dimension_numbers<[1], [1], [0], [0], [0, 0, 1, 0], [], []>} : vector<8x32xbf16>, vector<8x32xbf16>, vector<8x8xf32> -> vector<8x8xf32>
    %104 = arith.addf %103, %41 : vector<8x8xf32>
    %cst_52 = arith.constant dense<0xFF800000> : vector<8xf32>
    %105 = vector.multi_reduction <maximumf>, %104, %cst_52 [1] : vector<8x8xf32> to vector<8xf32>
    %106 = vector.shape_cast %105 : vector<8xf32> to vector<8x1xf32>
    %107 = vector.broadcast %106 : vector<8x1xf32> to vector<8x8xf32>
    %108 = arith.subf %104, %107 : vector<8x8xf32>
    %109 = math.exp %108 : vector<8x8xf32>
    %cst_53 = arith.constant dense<0.000000e+00> : vector<8xf32>
    %110 = vector.multi_reduction <add>, %109, %cst_53 [1] : vector<8x8xf32> to vector<8xf32>
    %111 = vector.shape_cast %110 : vector<8xf32> to vector<8x1xf32>
    %112 = tpu.reciprocal %111 {approx = true} : vector<8x1xf32> -> vector<8x1xf32>
    %113 = vector.broadcast %112 : vector<8x1xf32> to vector<8x8xf32>
    %114 = arith.mulf %109, %113 : vector<8x8xf32>
    %115 = arith.truncf %114 : vector<8x8xf32> to vector<8x8xbf16>
    %cst_54 = arith.constant dense<0.000000e+00> : vector<8x32xf32>
    %116 = tpu.matmul %115, %102, %cst_54 {dimension_numbers = #tpu.dot_dimension_numbers<[1], [0], [0], [1], [0, 0, 1, 1], [], []>} : vector<8x8xbf16>, vector<8x32xbf16>, vector<8x32xf32> -> vector<8x32xf32>
    %117 = arith.truncf %116 : vector<8x32xf32> to vector<8x32xbf16>
    %118 = vector.extract_strided_slice %40 {offsets = [64, 0], sizes = [32, 128], strides = [1, 1]} : vector<128x128xbf16> to vector<32x128xbf16>
    %cst_55 = arith.constant dense<0.000000e+00> : vector<8x128xf32>
    %119 = tpu.matmul %117, %118, %cst_55 {dimension_numbers = #tpu.dot_dimension_numbers<[1], [0], [0], [1], [0, 0, 1, 1], [], []>} : vector<8x32xbf16>, vector<32x128xbf16>, vector<8x128xf32> -> vector<8x128xf32>
    %120 = arith.addf %94, %119 : vector<8x128xf32>
    %121 = vector.extract_strided_slice %37 {offsets = [0, 96], sizes = [8, 32], strides = [1, 1]} : vector<8x128xf32> to vector<8x32xf32>
    %cst_56 = arith.constant 0.176776692 : f32
    %122 = vector.broadcast %cst_56 : f32 to vector<8x32xf32>
    %123 = arith.mulf %121, %122 : vector<8x32xf32>
    %124 = arith.truncf %123 : vector<8x32xf32> to vector<8x32xbf16>
    %125 = vector.extract_strided_slice %38 {offsets = [0, 96], sizes = [8, 32], strides = [1, 1]} : vector<8x128xf32> to vector<8x32xf32>
    %126 = arith.truncf %125 : vector<8x32xf32> to vector<8x32xbf16>
    %127 = vector.extract_strided_slice %39 {offsets = [0, 96], sizes = [8, 32], strides = [1, 1]} : vector<8x128xf32> to vector<8x32xf32>
    %128 = arith.truncf %127 : vector<8x32xf32> to vector<8x32xbf16>
    %cst_57 = arith.constant dense<0.000000e+00> : vector<8x8xf32>
    %129 = tpu.matmul %124, %126, %cst_57 {dimension_numbers = #tpu.dot_dimension_numbers<[1], [1], [0], [0], [0, 0, 1, 0], [], []>} : vector<8x32xbf16>, vector<8x32xbf16>, vector<8x8xf32> -> vector<8x8xf32>
    %130 = arith.addf %129, %41 : vector<8x8xf32>
    %cst_58 = arith.constant dense<0xFF800000> : vector<8xf32>
    %131 = vector.multi_reduction <maximumf>, %130, %cst_58 [1] : vector<8x8xf32> to vector<8xf32>
    %132 = vector.shape_cast %131 : vector<8xf32> to vector<8x1xf32>
    %133 = vector.broadcast %132 : vector<8x1xf32> to vector<8x8xf32>
    %134 = arith.subf %130, %133 : vector<8x8xf32>
    %135 = math.exp %134 : vector<8x8xf32>
    %cst_59 = arith.constant dense<0.000000e+00> : vector<8xf32>
    %136 = vector.multi_reduction <add>, %135, %cst_59 [1] : vector<8x8xf32> to vector<8xf32>
    %137 = vector.shape_cast %136 : vector<8xf32> to vector<8x1xf32>
    %138 = tpu.reciprocal %137 {approx = true} : vector<8x1xf32> -> vector<8x1xf32>
    %139 = vector.broadcast %138 : vector<8x1xf32> to vector<8x8xf32>
    %140 = arith.mulf %135, %139 : vector<8x8xf32>
    %141 = arith.truncf %140 : vector<8x8xf32> to vector<8x8xbf16>
    %cst_60 = arith.constant dense<0.000000e+00> : vector<8x32xf32>
    %142 = tpu.matmul %141, %128, %cst_60 {dimension_numbers = #tpu.dot_dimension_numbers<[1], [0], [0], [1], [0, 0, 1, 1], [], []>} : vector<8x8xbf16>, vector<8x32xbf16>, vector<8x32xf32> -> vector<8x32xf32>
    %143 = arith.truncf %142 : vector<8x32xf32> to vector<8x32xbf16>
    %144 = vector.extract_strided_slice %40 {offsets = [96, 0], sizes = [32, 128], strides = [1, 1]} : vector<128x128xbf16> to vector<32x128xbf16>
    %cst_61 = arith.constant dense<0.000000e+00> : vector<8x128xf32>
    %145 = tpu.matmul %143, %144, %cst_61 {dimension_numbers = #tpu.dot_dimension_numbers<[1], [0], [0], [1], [0, 0, 1, 1], [], []>} : vector<8x32xbf16>, vector<32x128xbf16>, vector<8x128xf32> -> vector<8x128xf32>
    %146 = arith.addf %120, %145 : vector<8x128xf32>
    %c0_62 = arith.constant 0 : index
    %c0_63 = arith.constant 0 : index
    %147 = vector.load %arg10[%c0_62, %c0_63] : memref<1x128xf32, #tpu.memory_space<vmem>>, vector<1x128xf32>
    %148 = vector.broadcast %147 : vector<1x128xf32> to vector<8x128xf32>
    %149 = arith.addf %146, %148 : vector<8x128xf32>
    %c0_64 = arith.constant 0 : index
    %c0_65 = arith.constant 0 : index
    %150 = vector.load %arg12[%c0_64, %c0_65] : memref<2x8xbf16, #tpu.memory_space<vmem>>, vector<2x8xbf16>
    %151 = arith.truncf %149 : vector<8x128xf32> to vector<8x128xbf16>
    %cst_66 = arith.constant dense<0.000000e+00> : vector<2x128xf32>
    %152 = tpu.matmul %150, %151, %cst_66 {dimension_numbers = #tpu.dot_dimension_numbers<[1], [0], [0], [1], [0, 0, 1, 1], [], []>} : vector<2x8xbf16>, vector<8x128xbf16>, vector<2x128xf32> -> vector<2x128xf32>
    %c0_67 = arith.constant 0 : index
    %c0_68 = arith.constant 0 : index
    %153 = memref.load %arg13[%c0_67, %c0_68] : memref<1x1xf32, #tpu.memory_space<smem>>
    %cst_69 = arith.constant 1.000000e+00 : f32
    %154 = arith.subf %cst_69, %153 : f32
    %155 = vector.broadcast %154 : f32 to vector<2x128xf32>
    %156 = arith.mulf %152, %155 : vector<2x128xf32>
    %157 = arith.truncf %156 : vector<2x128xf32> to vector<2x128xbf16>
    %c0_70 = arith.constant 0 : index
    %c0_71 = arith.constant 0 : index
    %158 = vector.load %arg14[%c0_70, %c0_71] : memref<128x128xbf16, #tpu.memory_space<vmem>>, vector<128x128xbf16>
    %cst_72 = arith.constant dense<0.000000e+00> : vector<2x128xf32>
    %159 = tpu.matmul %157, %158, %cst_72 {dimension_numbers = #tpu.dot_dimension_numbers<[1], [0], [0], [1], [0, 0, 1, 1], [], []>} : vector<2x128xbf16>, vector<128x128xbf16>, vector<2x128xf32> -> vector<2x128xf32>
    %c0_73 = arith.constant 0 : index
    %c0_74 = arith.constant 0 : index
    %160 = vector.load %arg15[%c0_73, %c0_74] : memref<1x128xf32, #tpu.memory_space<vmem>>, vector<1x128xf32>
    %161 = vector.broadcast %160 : vector<1x128xf32> to vector<2x128xf32>
    %162 = arith.addf %159, %161 : vector<2x128xf32>
    %163 = arith.addf %152, %162 : vector<2x128xf32>
    %164 = arith.truncf %163 : vector<2x128xf32> to vector<2x128xbf16>
    %c0_75 = arith.constant 0 : index
    %c0_76 = arith.constant 0 : index
    %165 = vector.load %arg16[%c0_75, %c0_76] : memref<128x256xbf16, #tpu.memory_space<vmem>>, vector<128x256xbf16>
    %cst_77 = arith.constant dense<0.000000e+00> : vector<2x256xf32>
    %166 = tpu.matmul %164, %165, %cst_77 {dimension_numbers = #tpu.dot_dimension_numbers<[1], [0], [0], [1], [0, 0, 1, 1], [], []>} : vector<2x128xbf16>, vector<128x256xbf16>, vector<2x256xf32> -> vector<2x256xf32>
    %c0_78 = arith.constant 0 : index
    %c0_79 = arith.constant 0 : index
    %167 = vector.load %arg17[%c0_78, %c0_79] : memref<1x256xf32, #tpu.memory_space<vmem>>, vector<1x256xf32>
    %168 = vector.broadcast %167 : vector<1x256xf32> to vector<2x256xf32>
    %169 = arith.addf %166, %168 : vector<2x256xf32>
    %cst_80 = arith.constant 0.000000e+00 : f32
    %170 = vector.broadcast %cst_80 : f32 to vector<2x256xf32>
    %171 = arith.maximumf %169, %170 : vector<2x256xf32>
    %172 = arith.truncf %171 : vector<2x256xf32> to vector<2x256xbf16>
    %c0_81 = arith.constant 0 : index
    %c0_82 = arith.constant 0 : index
    %173 = vector.load %arg18[%c0_81, %c0_82] : memref<256x128xbf16, #tpu.memory_space<vmem>>, vector<256x128xbf16>
    %cst_83 = arith.constant dense<0.000000e+00> : vector<2x128xf32>
    %174 = tpu.matmul %172, %173, %cst_83 {dimension_numbers = #tpu.dot_dimension_numbers<[1], [0], [0], [1], [0, 0, 1, 1], [], []>} : vector<2x256xbf16>, vector<256x128xbf16>, vector<2x128xf32> -> vector<2x128xf32>
    %c0_84 = arith.constant 0 : index
    %c0_85 = arith.constant 0 : index
    %175 = vector.load %arg19[%c0_84, %c0_85] : memref<1x128xf32, #tpu.memory_space<vmem>>, vector<1x128xf32>
    %176 = vector.broadcast %175 : vector<1x128xf32> to vector<2x128xf32>
    %177 = arith.addf %174, %176 : vector<2x128xf32>
    %c0_86 = arith.constant 0 : index
    %c0_87 = arith.constant 0 : index
    %178 = vector.load %arg20[%c0_86, %c0_87] : memref<2x128xf32, #tpu.memory_space<vmem>>, vector<2x128xf32>
    tpu.vector_store %arg20[%c0_86, %c0_87], %177 {strides = array<i32>} : memref<2x128xf32, #tpu.memory_space<vmem>>, vector<2x128xf32>,
    return
  }
  func.func @transform_0(%arg0: i32) -> (i32, i32, i32) {
    %c0_i32 = arith.constant 0 : i32
    %c0_i32_0 = arith.constant 0 : i32
    %c0_i32_1 = arith.constant 0 : i32
    %c0_i32_2 = arith.constant 0 : i32
    return %c0_i32, %c0_i32_0, %c0_i32_1 : i32, i32, i32
  }
  func.func @transform_1(%arg0: i32) -> (i32, i32, i32) {
    %c0_i32 = arith.constant 0 : i32
    %c0_i32_0 = arith.constant 0 : i32
    %c0_i32_1 = arith.constant 0 : i32
    %c0_i32_2 = arith.constant 0 : i32
    return %c0_i32, %c0_i32_0, %c0_i32_1 : i32, i32, i32
  }
  func.func @transform_2(%arg0: i32) -> (i32, i32) {
    %c0_i32 = arith.constant 0 : i32
    %c0_i32_0 = arith.constant 0 : i32
    %c0_i32_1 = arith.constant 0 : i32
    return %c0_i32, %c0_i32_0 : i32, i32
  }
  func.func @transform_3(%arg0: i32) -> (i32, i32) {
    %c0_i32 = arith.constant 0 : i32
    %c0_i32_0 = arith.constant 0 : i32
    %c0_i32_1 = arith.constant 0 : i32
    return %c0_i32, %c0_i32_0 : i32, i32
  }
  func.func @transform_4(%arg0: i32) -> (i32, i32) {
    %c0_i32 = arith.constant 0 : i32
    %c0_i32_0 = arith.constant 0 : i32
    %c0_i32_1 = arith.constant 0 : i32
    return %c0_i32, %c0_i32_0 : i32, i32
  }
  func.func @transform_5(%arg0: i32) -> (i32, i32) {
    %c0_i32 = arith.constant 0 : i32
    %c0_i32_0 = arith.constant 0 : i32
    %c0_i32_1 = arith.constant 0 : i32
    return %c0_i32, %c0_i32_0 : i32, i32
  }
  func.func @transform_6(%arg0: i32) -> (i32, i32) {
    %c0_i32 = arith.constant 0 : i32
    %c0_i32_0 = arith.constant 0 : i32
    %c0_i32_1 = arith.constant 0 : i32
    return %c0_i32, %c0_i32_0 : i32, i32
  }
  func.func @transform_7(%arg0: i32) -> (i32, i32) {
    %c0_i32 = arith.constant 0 : i32
    %c0_i32_0 = arith.constant 0 : i32
    %c0_i32_1 = arith.constant 0 : i32
    return %c0_i32, %c0_i32_0 : i32, i32
  }
  func.func @transform_8(%arg0: i32) -> (i32, i32) {
    %c0_i32 = arith.constant 0 : i32
    %c0_i32_0 = arith.constant 0 : i32
    %c0_i32_1 = arith.constant 0 : i32
    return %c0_i32, %c0_i32_0 : i32, i32
  }
  func.func @transform_9(%arg0: i32) -> (i32, i32) {
    %c0_i32 = arith.constant 0 : i32
    %c0_i32_0 = arith.constant 0 : i32
    %c0_i32_1 = arith.constant 0 : i32
    return %c0_i32, %c0_i32_0 : i32, i32
  }
  func.func @transform_10(%arg0: i32) -> (i32, i32) {
    %c0_i32 = arith.constant 0 : i32
    %c0_i32_0 = arith.constant 0 : i32
    %c0_i32_1 = arith.constant 0 : i32
    return %c0_i32, %c0_i32_0 : i32, i32
  }
  func.func @transform_11(%arg0: i32) -> (i32, i32) {
    %c0_i32 = arith.constant 0 : i32
    %c0_i32_0 = arith.constant 0 : i32
    %c0_i32_1 = arith.constant 0 : i32
    return %c0_i32, %c0_i32_0 : i32, i32
  }
  func.func @transform_12(%arg0: i32) -> (i32, i32) {
    %c0_i32 = arith.constant 0 : i32
    %c0_i32_0 = arith.constant 0 : i32
    %c0_i32_1 = arith.constant 0 : i32
    return %c0_i32, %c0_i32_0 : i32, i32
  }
  func.func @transform_13(%arg0: i32) -> (i32, i32) {
    %c0_i32 = arith.constant 0 : i32
    %c0_i32_0 = arith.constant 0 : i32
    %c0_i32_1 = arith.constant 0 : i32
    return %c0_i32, %c0_i32_0 : i32, i32
  }
  func.func @transform_14(%arg0: i32) -> (i32, i32) {
    %c0_i32 = arith.constant 0 : i32
    %c0_i32_0 = arith.constant 0 : i32
    %c0_i32_1 = arith.constant 0 : i32
    return %c0_i32, %c0_i32_0 : i32, i32
  }
  func.func @transform_15(%arg0: i32) -> (i32, i32) {
    %c0_i32 = arith.constant 0 : i32
    %c0_i32_0 = arith.constant 0 : i32
    %c0_i32_1 = arith.constant 0 : i32
    return %c0_i32, %c0_i32_0 : i32, i32
  }
  func.func @transform_16(%arg0: i32) -> (i32, i32) {
    %c0_i32 = arith.constant 0 : i32
    %c0_i32_0 = arith.constant 0 : i32
    %c0_i32_1 = arith.constant 0 : i32
    return %c0_i32, %c0_i32_0 : i32, i32
  }
  func.func @transform_17(%arg0: i32) -> (i32, i32) {
    %c0_i32 = arith.constant 0 : i32
    %c0_i32_0 = arith.constant 0 : i32
    %c0_i32_1 = arith.constant 0 : i32
    return %c0_i32, %c0_i32_0 : i32, i32
  }
  func.func @transform_18(%arg0: i32) -> (i32, i32) {
    %c0_i32 = arith.constant 0 : i32
    %c0_i32_0 = arith.constant 0 : i32
    %c0_i32_1 = arith.constant 0 : i32
    return %c0_i32, %c0_i32_0 : i32, i32
  }
  func.func @transform_19(%arg0: i32) -> (i32, i32) {
    %c0_i32 = arith.constant 0 : i32
    %c0_i32_0 = arith.constant 0 : i32
    %c0_i32_1 = arith.constant 0 : i32
    return %c0_i32, %c0_i32_0 : i32, i32
  }
}

</mosaic_0001>

<llo_original>
// kernel: fair_deepfake_detector_forward.1
$region0: #{fair_deepfake_detector_forward.1}
  #allocation0 [shape = 'u32[]', space=smem, size = 0x4, offset = 0x4, fixed_abs, tag = 'smem constant byte address 0x4 - core index']
  #allocation1 [shape = 'u32[144,128]{1,0:T(1,128)}', space=vmem, size = 0x12000, scoped, tag = 'internal scratch']
  #allocation2 [shape = 'f32[1,1]{1,0:T(1,128)S(6)}', space=smem, size = 0x200, scoped, tag = 'scoped memory for fair_deepfake_detector_forward.1']
  %s0 = inlined_call_operand.vmem [shape: bf16[3,144,48], index: 0, kind: input, shape index: {}]
  %s1 = inlined_call_operand.vmem [shape: bf16[3,48,256], index: 1, kind: input, shape index: {}]
  %s2 = inlined_call_operand.vmem [shape: f32[1,256], index: 2, kind: input, shape index: {}]
  %s3 = inlined_call_operand.vmem [shape: bf16[8,144], index: 3, kind: input, shape index: {}]
  %s4 = inlined_call_operand.vmem [shape: bf16[256,128], index: 4, kind: input, shape index: {}]
  %s5 = inlined_call_operand.vmem [shape: f32[1,128], index: 5, kind: input, shape index: {}]
  %s6 = inlined_call_operand.vmem [shape: bf16[128,384], index: 6, kind: input, shape index: {}]
  %s7 = inlined_call_operand.vmem [shape: f32[1,384], index: 7, kind: input, shape index: {}]
  %s8 = inlined_call_operand.vmem [shape: bf16[128,128], index: 8, kind: input, shape index: {}]
  %s9 = inlined_call_operand.vmem [shape: f32[1,128], index: 9, kind: input, shape index: {}]
  %s10 = inlined_call_operand.vmem [shape: f32[8,8], index: 10, kind: input, shape index: {}]
  %s11 = inlined_call_operand.vmem [shape: bf16[2,8], index: 11, kind: input, shape index: {}]
  %s12 = inlined_call_operand.<no memory space> [shape: f32[1,1], index: 12, kind: input, shape index: {}]
  %s13 = inlined_call_operand.vmem [shape: bf16[128,128], index: 13, kind: input, shape index: {}]
  %s14 = inlined_call_operand.vmem [shape: f32[1,128], index: 14, kind: input, shape index: {}]
  %s15 = inlined_call_operand.vmem [shape: bf16[128,256], index: 15, kind: input, shape index: {}]
  %s16 = inlined_call_operand.vmem [shape: f32[1,256], index: 16, kind: input, shape index: {}]
  %s17 = inlined_call_operand.vmem [shape: bf16[256,128], index: 17, kind: input, shape index: {}]
  %s18 = inlined_call_operand.vmem [shape: f32[1,128], index: 18, kind: input, shape index: {}]
  %s19 = inlined_call_operand.hbm [shape: f32[2,128], index: 19, kind: output, shape index: {}]
  %s20 = sld [smem:[#allocation0]]
  $region86: #{fair_deepfake_detector_forward.1} parent=0
    _
  %s22 = ssub.s32 1, %s20
  %s23 = scalar_select 0, %s22, %s20
  %24 = sst [smem:[#allocation2]] %s12
  $region1: #{fair_deepfake_detector_forward.1} parent=0
    #allocation3 [shape = 'u8[1024]{0}', space=vmem, size = 0x400, scoped, tag = 'output window, operand 0, single buffered']
    #allocation4 [shape = 's32[1]{0}', space=sflag, size = 0x4, scoped, tag = 'scoped memory for fair_deepfake_detector_forward.1']
    %25 = vsyncpa [#allocation4], 0
    // Predicated region
    $region2: #{fair_deepfake_detector_forward.1} parent=1 // pred_check
      _
    $region3: #{fair_deepfake_detector_forward.1} parent=1 // pred_check_branch
      %27 = sbr.rel (0) target = $region5
    $region4: #{fair_deepfake_detector_forward.1} parent=1 // pred_region
      _
    $region5: #{fair_deepfake_detector_forward.1} parent=1 // pred_fallthru
      _
    // Predicated region
    $region6: #{fair_deepfake_detector_forward.1} parent=1 // pred_check
      _
    $region7: #{fair_deepfake_detector_forward.1} parent=1 // pred_check_branch
      %29 = sbr.rel (0) target = $region9
    $region8: #{fair_deepfake_detector_forward.1} parent=1 // pred_region
      _
    $region9: #{fair_deepfake_detector_forward.1} parent=1 // pred_fallthru
      _
    // Predicated region
    $region10: #{fair_deepfake_detector_forward.1} parent=1 // pred_check
      _
    $region11: #{fair_deepfake_detector_forward.1} parent=1 // pred_check_branch
      %31 = sbr.rel (0) target = $region13
    $region12: #{fair_deepfake_detector_forward.1} parent=1 // pred_region
      _
    $region13: #{fair_deepfake_detector_forward.1} parent=1 // pred_fallthru
      _
    // Predicated region
    $region14: #{fair_deepfake_detector_forward.1} parent=1 // pred_check
      _
    $region15: #{fair_deepfake_detector_forward.1} parent=1 // pred_check_branch
      %33 = sbr.rel (0) target = $region17
    $region16: #{fair_deepfake_detector_forward.1} parent=1 // pred_region
      _
    $region17: #{fair_deepfake_detector_forward.1} parent=1 // pred_fallthru
      _
    // Predicated region
    $region18: #{fair_deepfake_detector_forward.1} parent=1 // pred_check
      _
    $region19: #{fair_deepfake_detector_forward.1} parent=1 // pred_check_branch
      %35 = sbr.rel (0) target = $region21
    $region20: #{fair_deepfake_detector_forward.1} parent=1 // pred_region
      _
    $region21: #{fair_deepfake_detector_forward.1} parent=1 // pred_fallthru
      _
    // Predicated region
    $region22: #{fair_deepfake_detector_forward.1} parent=1 // pred_check
      _
    $region23: #{fair_deepfake_detector_forward.1} parent=1 // pred_check_branch
      %37 = sbr.rel (0) target = $region25
    $region24: #{fair_deepfake_detector_forward.1} parent=1 // pred_region
      _
    $region25: #{fair_deepfake_detector_forward.1} parent=1 // pred_fallthru
      _
    // Predicated region
    $region26: #{fair_deepfake_detector_forward.1} parent=1 // pred_check
      _
    $region27: #{fair_deepfake_detector_forward.1} parent=1 // pred_check_branch
      %39 = sbr.rel (0) target = $region29
    $region28: #{fair_deepfake_detector_forward.1} parent=1 // pred_region
      _
    $region29: #{fair_deepfake_detector_forward.1} parent=1 // pred_fallthru
      _
    // Predicated region
    $region30: #{fair_deepfake_detector_forward.1} parent=1 // pred_check
      _
    $region31: #{fair_deepfake_detector_forward.1} parent=1 // pred_check_branch
      %41 = sbr.rel (0) target = $region33
    $region32: #{fair_deepfake_detector_forward.1} parent=1 // pred_region
      _
    $region33: #{fair_deepfake_detector_forward.1} parent=1 // pred_fallthru
      _
    // Predicated region
    $region34: #{fair_deepfake_detector_forward.1} parent=1 // pred_check
      _
    $region35: #{fair_deepfake_detector_forward.1} parent=1 // pred_check_branch
      %43 = sbr.rel (0) target = $region37
    $region36: #{fair_deepfake_detector_forward.1} parent=1 // pred_region
      _
    $region37: #{fair_deepfake_detector_forward.1} parent=1 // pred_fallthru
      _
    // Predicated region
    $region38: #{fair_deepfake_detector_forward.1} parent=1 // pred_check
      _
    $region39: #{fair_deepfake_detector_forward.1} parent=1 // pred_check_branch
      %45 = sbr.rel (0) target = $region41
    $region40: #{fair_deepfake_detector_forward.1} parent=1 // pred_region
      _
    $region41: #{fair_deepfake_detector_forward.1} parent=1 // pred_fallthru
      _
    // Predicated region
    $region42: #{fair_deepfake_detector_forward.1} parent=1 // pred_check
      _
    $region43: #{fair_deepfake_detector_forward.1} parent=1 // pred_check_branch
      %47 = sbr.rel (0) target = $region45
    $region44: #{fair_deepfake_detector_forward.1} parent=1 // pred_region
      _
    $region45: #{fair_deepfake_detector_forward.1} parent=1 // pred_fallthru
      _
    // Predicated region
    $region46: #{fair_deepfake_detector_forward.1} parent=1 // pred_check
      _
    $region47: #{fair_deepfake_detector_forward.1} parent=1 // pred_check_branch
      %49 = sbr.rel (0) target = $region49
    $region48: #{fair_deepfake_detector_forward.1} parent=1 // pred_region
      _
    $region49: #{fair_deepfake_detector_forward.1} parent=1 // pred_fallthru
      _
    // Predicated region
    $region50: #{fair_deepfake_detector_forward.1} parent=1 // pred_check
      _
    $region51: #{fair_deepfake_detector_forward.1} parent=1 // pred_check_branch
      %51 = sbr.rel (0) target = $region53
    $region52: #{fair_deepfake_detector_forward.1} parent=1 // pred_region
      _
    $region53: #{fair_deepfake_detector_forward.1} parent=1 // pred_fallthru
      _
    // Predicated region
    $region54: #{fair_deepfake_detector_forward.1} parent=1 // pred_check
      _
    $region55: #{fair_deepfake_detector_forward.1} parent=1 // pred_check_branch
      %53 = sbr.rel (0) target = $region57
    $region56: #{fair_deepfake_detector_forward.1} parent=1 // pred_region
      _
    $region57: #{fair_deepfake_detector_forward.1} parent=1 // pred_fallthru
      _
    // Predicated region
    $region58: #{fair_deepfake_detector_forward.1} parent=1 // pred_check
      _
    $region59: #{fair_deepfake_detector_forward.1} parent=1 // pred_check_branch
      %55 = sbr.rel (0) target = $region61
    $region60: #{fair_deepfake_detector_forward.1} parent=1 // pred_region
      _
    $region61: #{fair_deepfake_detector_forward.1} parent=1 // pred_fallthru
      _
    // Predicated region
    $region62: #{fair_deepfake_detector_forward.1} parent=1 // pred_check
      _
    $region63: #{fair_deepfake_detector_forward.1} parent=1 // pred_check_branch
      %57 = sbr.rel (0) target = $region65
    $region64: #{fair_deepfake_detector_forward.1} parent=1 // pred_region
      _
    $region65: #{fair_deepfake_detector_forward.1} parent=1 // pred_fallthru
      _
    // Predicated region
    $region66: #{fair_deepfake_detector_forward.1} parent=1 // pred_check
      _
    $region67: #{fair_deepfake_detector_forward.1} parent=1 // pred_check_branch
      %59 = sbr.rel (0) target = $region69
    $region68: #{fair_deepfake_detector_forward.1} parent=1 // pred_region
      _
    $region69: #{fair_deepfake_detector_forward.1} parent=1 // pred_fallthru
      _
    // Predicated region
    $region70: #{fair_deepfake_detector_forward.1} parent=1 // pred_check
      _
    $region71: #{fair_deepfake_detector_forward.1} parent=1 // pred_check_branch
      %61 = sbr.rel (0) target = $region73
    $region72: #{fair_deepfake_detector_forward.1} parent=1 // pred_region
      _
    $region73: #{fair_deepfake_detector_forward.1} parent=1 // pred_fallthru
      _
    // Predicated region
    $region74: #{fair_deepfake_detector_forward.1} parent=1 // pred_check
      _
    $region75: #{fair_deepfake_detector_forward.1} parent=1 // pred_check_branch
      %63 = sbr.rel (0) target = $region77
    $region76: #{fair_deepfake_detector_forward.1} parent=1 // pred_region
      _
    $region77: #{fair_deepfake_detector_forward.1} parent=1 // pred_fallthru
      _
    %v65 = vld [vmem:[%s0] sm:$0xf]
    %v66 = vld [vmem:[%s0 + $0x4] sm:$0xf]
    %v67 = vld [vmem:[%s0 + $0x8] sm:$0xf]
    %v68 = vld [vmem:[%s0 + $0xc] sm:$0xf]
    %v69 = vld [vmem:[%s0 + $0x10] sm:$0xf]
    %v70 = vld [vmem:[%s0 + $0x14] sm:$0xf]
    %v71 = vld [vmem:[%s0 + $0x18] sm:$0xf]
    %v72 = vld [vmem:[%s0 + $0x1c] sm:$0xf]
    %v73 = vld [vmem:[%s0 + $0x20] sm:$0xf]
    %v74 = vld [vmem:[%s0 + $0x24] sm:$0xf]
    %v75 = vld [vmem:[%s0 + $0x28] sm:$0xf]
    %v76 = vld [vmem:[%s0 + $0x2c] sm:$0xf]
    %v77 = vld [vmem:[%s0 + $0x30] sm:$0xf]
    %v78 = vld [vmem:[%s0 + $0x34] sm:$0xf]
    %v79 = vld [vmem:[%s0 + $0x38] sm:$0xf]
    %v80 = vld [vmem:[%s0 + $0x3c] sm:$0xf]
    %v81 = vld [vmem:[%s0 + $0x40] sm:$0xf]
    %v82 = vld [vmem:[%s0 + $0x44] sm:$0xf]
    %v83 = vld [vmem:[%s1] sm:$0xff]
    %v84 = vld [vmem:[%s1 + $0x8] sm:$0xff]
    %v85 = vld [vmem:[%s1 + $0x10] sm:$0xff]
    %v86 = vld [vmem:[%s1 + $0x18] sm:$0xff]
    %v87 = vld [vmem:[%s1 + $0x20] sm:$0xff]
    %v88 = vld [vmem:[%s1 + $0x28] sm:$0xff]
    %s89 = scalar_lea.vmem %s0, 72
    %v90 = vld [vmem:[%s89] sm:$0xf]
    %v91 = vld [vmem:[%s89 + $0x4] sm:$0xf]
    %v92 = vld [vmem:[%s89 + $0x8] sm:$0xf]
    %v93 = vld [vmem:[%s89 + $0xc] sm:$0xf]
    %v94 = vld [vmem:[%s89 + $0x10] sm:$0xf]
    %v95 = vld [vmem:[%s89 + $0x14] sm:$0xf]
    %v96 = vld [vmem:[%s89 + $0x18] sm:$0xf]
    %v97 = vld [vmem:[%s89 + $0x1c] sm:$0xf]
    %v98 = vld [vmem:[%s89 + $0x20] sm:$0xf]
    %v99 = vld [vmem:[%s89 + $0x24] sm:$0xf]
    %v100 = vld [vmem:[%s89 + $0x28] sm:$0xf]
    %v101 = vld [vmem:[%s89 + $0x2c] sm:$0xf]
    %v102 = vld [vmem:[%s89 + $0x30] sm:$0xf]
    %v103 = vld [vmem:[%s89 + $0x34] sm:$0xf]
    %v104 = vld [vmem:[%s89 + $0x38] sm:$0xf]
    %v105 = vld [vmem:[%s89 + $0x3c] sm:$0xf]
    %v106 = vld [vmem:[%s89 + $0x40] sm:$0xf]
    %v107 = vld [vmem:[%s89 + $0x44] sm:$0xf]
    %s108 = scalar_lea.vmem %s1, 48
    %v109 = vld [vmem:[%s108] sm:$0xff]
    %v110 = vld [vmem:[%s108 + $0x8] sm:$0xff]
    %v111 = vld [vmem:[%s108 + $0x10] sm:$0xff]
    %v112 = vld [vmem:[%s108 + $0x18] sm:$0xff]
    %v113 = vld [vmem:[%s108 + $0x20] sm:$0xff]
    %v114 = vld [vmem:[%s108 + $0x28] sm:$0xff]
    %v133 = vunpack.c.l.b16 %v90
    %v134 = vunpack.c.l.b16 %v91
    %v135 = vunpack.c.l.b16 %v92
    %v136 = vunpack.c.l.b16 %v93
    %v137 = vunpack.c.l.b16 %v94
    %v138 = vunpack.c.l.b16 %v95
    %v139 = vunpack.c.l.b16 %v96
    %v140 = vunpack.c.l.b16 %v97
    %v141 = vunpack.c.l.b16 %v98
    %v142 = vunpack.c.l.b16 %v99
    %v143 = vunpack.c.l.b16 %v100
    %v144 = vunpack.c.l.b16 %v101
    %v145 = vunpack.c.l.b16 %v102
    %v146 = vunpack.c.l.b16 %v103
    %v147 = vunpack.c.l.b16 %v104
    %v148 = vunpack.c.l.b16 %v105
    %v149 = vunpack.c.l.b16 %v106
    %v150 = vunpack.c.l.b16 %v107
    %v151 = vpack.c.b16 %v134, %v133
    %v152 = vpack.c.b16 %v136, %v135
    %v153 = vpack.c.b16 %v138, %v137
    %v154 = vpack.c.b16 %v140, %v139
    %v155 = vpack.c.b16 %v142, %v141
    %v156 = vpack.c.b16 %v144, %v143
    %v157 = vpack.c.b16 %v146, %v145
    %v158 = vpack.c.b16 %v148, %v147
    %v159 = vpack.c.b16 %v150, %v149
    %v166 = vunpack.c.l.b16 %v109
    %v167 = vunpack.c.h.b16 %v109
    %v168 = vunpack.c.l.b16 %v110
    %v169 = vunpack.c.h.b16 %v110
    %v170 = vunpack.c.l.b16 %v111
    %v171 = vunpack.c.h.b16 %v111
    %v172 = vunpack.c.l.b16 %v112
    %v173 = vunpack.c.h.b16 %v112
    %v174 = vunpack.c.l.b16 %v113
    %v175 = vunpack.c.h.b16 %v113
    %v176 = vunpack.c.l.b16 %v114
    %v177 = vunpack.c.h.b16 %v114
    %v178 = vpack.c.b16 %v168, %v166
    %v179 = vpack.c.b16 %v169, %v167
    %v180 = vpack.c.b16 %v172, %v170
    %v181 = vpack.c.b16 %v173, %v171
    %v182 = vpack.c.b16 %v176, %v174
    %v183 = vpack.c.b16 %v177, %v175
    %vm190 = vcmask 392192
    %v192 = vsel %vm190, %v151, 0
    %v195 = vsel %vm190, %v152, 0
    %v198 = vsel %vm190, %v153, 0
    %v201 = vsel %vm190, %v154, 0
    %v204 = vsel %vm190, %v155, 0
    %v207 = vsel %vm190, %v156, 0
    %v210 = vsel %vm190, %v157, 0
    %v213 = vsel %vm190, %v158, 0
    %v216 = vsel %vm190, %v159, 0
    %218 = vmatprep.subr.bf16.mxu0 %v179
    %219 = vmatpush1.bf16.msra.mxu0 %v178
    %220 = vmatprep.subr.bf16.mxu0 %v181
    %221 = vmatpush1.bf16.msra.mxu0 %v180
    %222 = vmatprep.subr.bf16.mxu0 %v183
    %223 = vmatpush1.bf16.msra.mxu0 %v182
    %224 = vmatprep.subr.bf16.mxu0 0
    %225 = vmatpush1.bf16.msra.mxu0 0
    %226 = vmatprep.subr.bf16.mxu0 0
    %227 = vmatpush1.bf16.msra.mxu0 0
    %228 = vmatprep.subr.bf16.mxu0 0
    %229 = vmatpush1.bf16.msra.mxu0 0
    %230 = vmatprep.subr.bf16.mxu0 0
    %231 = vmatpush1.bf16.msra.mxu0 0
    %232 = vmatprep.subr.bf16.mxu0 0
    %233 = vmatpush1.bf16.msra.mxu0 0
    %234 = vmatprep.subr.bf16.mxu0 0
    %235 = vmatpush1.bf16.msra.mxu0 0
    %236 = vmatprep.subr.bf16.mxu0 0
    %237 = vmatpush1.bf16.msra.mxu0 0
    %238 = vmatprep.subr.bf16.mxu0 0
    %239 = vmatpush1.bf16.msra.mxu0 0
    %240 = vmatprep.subr.bf16.mxu0 0
    %241 = vmatpush1.bf16.msra.mxu0 0
    %242 = vmatprep.subr.bf16.mxu0 0
    %243 = vmatpush1.bf16.msra.mxu0 0
    %244 = vmatprep.subr.bf16.mxu0 0
    %245 = vmatpush1.bf16.msra.mxu0 0
    %246 = vmatprep.subr.bf16.mxu0 0
    %247 = vmatpush1.bf16.msra.mxu0 0
    %248 = vmatprep.subr.bf16.mxu0 0
    %249 = vmatpush1.bf16.msra.mxu0 0
    %250 = vmatprep.mubr.bf16.mxu0 0
    %251 = vmatmul.mubr.bf16.gmra.mrb[0].mxu0 %v192
    %v252 = vpop.f32.mrb[0].mxu0
    %v253 = vadd.f32 0.0, %v252
    %v254 = vpop.f32.mrb[0].mxu0
    %v255 = vadd.f32 0.0, %v254
    %v256 = vpop.f32.mrb[0].mxu0
    %v257 = vadd.f32 0.0, %v256
    %v258 = vpop.f32.mrb[0].mxu0
    %v259 = vadd.f32 0.0, %v258
    %260 = vmatprep.mubr.bf16.mxu0 0
    %261 = vmatmul.mubr.bf16.gmra.mrb[0].mxu0 %v195
    %v262 = vpop.f32.mrb[0].mxu0
    %v263 = vadd.f32 0.0, %v262
    %v264 = vpop.f32.mrb[0].mxu0
    %v265 = vadd.f32 0.0, %v264
    %v266 = vpop.f32.mrb[0].mxu0
    %v267 = vadd.f32 0.0, %v266
    %v268 = vpop.f32.mrb[0].mxu0
    %v269 = vadd.f32 0.0, %v268
    %270 = vmatprep.mubr.bf16.mxu0 0
    %271 = vmatmul.mubr.bf16.gmra.mrb[0].mxu0 %v198
    %v272 = vpop.f32.mrb[0].mxu0
    %v273 = vadd.f32 0.0, %v272
    %v274 = vpop.f32.mrb[0].mxu0
    %v275 = vadd.f32 0.0, %v274
    %v276 = vpop.f32.mrb[0].mxu0
    %v277 = vadd.f32 0.0, %v276
    %v278 = vpop.f32.mrb[0].mxu0
    %v279 = vadd.f32 0.0, %v278
    %280 = vmatprep.mubr.bf16.mxu0 0
    %281 = vmatmul.mubr.bf16.gmra.mrb[0].mxu0 %v201
    %v282 = vpop.f32.mrb[0].mxu0
    %v283 = vadd.f32 0.0, %v282
    %v284 = vpop.f32.mrb[0].mxu0
    %v285 = vadd.f32 0.0, %v284
    %v286 = vpop.f32.mrb[0].mxu0
    %v287 = vadd.f32 0.0, %v286
    %v288 = vpop.f32.mrb[0].mxu0
    %v289 = vadd.f32 0.0, %v288
    %290 = vmatprep.mubr.bf16.mxu0 0
    %291 = vmatmul.mubr.bf16.gmra.mrb[0].mxu0 %v204
    %v292 = vpop.f32.mrb[0].mxu0
    %v293 = vadd.f32 0.0, %v292
    %v294 = vpop.f32.mrb[0].mxu0
    %v295 = vadd.f32 0.0, %v294
    %v296 = vpop.f32.mrb[0].mxu0
    %v297 = vadd.f32 0.0, %v296
    %v298 = vpop.f32.mrb[0].mxu0
    %v299 = vadd.f32 0.0, %v298
    %300 = vmatprep.mubr.bf16.mxu0 0
    %301 = vmatmul.mubr.bf16.gmra.mrb[0].mxu0 %v207
    %v302 = vpop.f32.mrb[0].mxu0
    %v303 = vadd.f32 0.0, %v302
    %v304 = vpop.f32.mrb[0].mxu0
    %v305 = vadd.f32 0.0, %v304
    %v306 = vpop.f32.mrb[0].mxu0
    %v307 = vadd.f32 0.0, %v306
    %v308 = vpop.f32.mrb[0].mxu0
    %v309 = vadd.f32 0.0, %v308
    %310 = vmatprep.mubr.bf16.mxu0 0
    %311 = vmatmul.mubr.bf16.gmra.mrb[0].mxu0 %v210
    %v312 = vpop.f32.mrb[0].mxu0
    %v313 = vadd.f32 0.0, %v312
    %v314 = vpop.f32.mrb[0].mxu0
    %v315 = vadd.f32 0.0, %v314
    %v316 = vpop.f32.mrb[0].mxu0
    %v317 = vadd.f32 0.0, %v316
    %v318 = vpop.f32.mrb[0].mxu0
    %v319 = vadd.f32 0.0, %v318
    %320 = vmatprep.mubr.bf16.mxu0 0
    %321 = vmatmul.mubr.bf16.gmra.mrb[0].mxu0 %v213
    %v322 = vpop.f32.mrb[0].mxu0
    %v323 = vadd.f32 0.0, %v322
    %v324 = vpop.f32.mrb[0].mxu0
    %v325 = vadd.f32 0.0, %v324
    %v326 = vpop.f32.mrb[0].mxu0
    %v327 = vadd.f32 0.0, %v326
    %v328 = vpop.f32.mrb[0].mxu0
    %v329 = vadd.f32 0.0, %v328
    %330 = vmatprep.mubr.bf16.mxu0 0
    %331 = vmatmul.mubr.bf16.gmra.mrb[0].mxu0 %v216
    %v332 = vpop.f32.mrb[0].mxu0
    %v333 = vadd.f32 0.0, %v332
    %v334 = vpop.f32.mrb[0].mxu0
    %v335 = vadd.f32 0.0, %v334
    %v336 = vpop.f32.mrb[0].mxu0
    %v337 = vadd.f32 0.0, %v336
    %v338 = vpop.f32.mrb[0].mxu0
    %v339 = vadd.f32 0.0, %v338
    %340 = vdwg.mxu0
    %v359 = vunpack.c.l.b16 %v65
    %v360 = vunpack.c.l.b16 %v66
    %v361 = vunpack.c.l.b16 %v67
    %v362 = vunpack.c.l.b16 %v68
    %v363 = vunpack.c.l.b16 %v69
    %v364 = vunpack.c.l.b16 %v70
    %v365 = vunpack.c.l.b16 %v71
    %v366 = vunpack.c.l.b16 %v72
    %v367 = vunpack.c.l.b16 %v73
    %v368 = vunpack.c.l.b16 %v74
    %v369 = vunpack.c.l.b16 %v75
    %v370 = vunpack.c.l.b16 %v76
    %v371 = vunpack.c.l.b16 %v77
    %v372 = vunpack.c.l.b16 %v78
    %v373 = vunpack.c.l.b16 %v79
    %v374 = vunpack.c.l.b16 %v80
    %v375 = vunpack.c.l.b16 %v81
    %v376 = vunpack.c.l.b16 %v82
    %v377 = vpack.c.b16 %v360, %v359
    %v378 = vpack.c.b16 %v362, %v361
    %v379 = vpack.c.b16 %v364, %v363
    %v380 = vpack.c.b16 %v366, %v365
    %v381 = vpack.c.b16 %v368, %v367
    %v382 = vpack.c.b16 %v370, %v369
    %v383 = vpack.c.b16 %v372, %v371
    %v384 = vpack.c.b16 %v374, %v373
    %v385 = vpack.c.b16 %v376, %v375
    %v392 = vunpack.c.l.b16 %v83
    %v393 = vunpack.c.h.b16 %v83
    %v394 = vunpack.c.l.b16 %v84
    %v395 = vunpack.c.h.b16 %v84
    %v396 = vunpack.c.l.b16 %v85
    %v397 = vunpack.c.h.b16 %v85
    %v398 = vunpack.c.l.b16 %v86
    %v399 = vunpack.c.h.b16 %v86
    %v400 = vunpack.c.l.b16 %v87
    %v401 = vunpack.c.h.b16 %v87
    %v402 = vunpack.c.l.b16 %v88
    %v403 = vunpack.c.h.b16 %v88
    %v404 = vpack.c.b16 %v394, %v392
    %v405 = vpack.c.b16 %v395, %v393
    %v406 = vpack.c.b16 %v398, %v396
    %v407 = vpack.c.b16 %v399, %v397
    %v408 = vpack.c.b16 %v402, %v400
    %v409 = vpack.c.b16 %v403, %v401
    %v417 = vsel %vm190, %v377, 0
    %v420 = vsel %vm190, %v378, 0
    %v423 = vsel %vm190, %v379, 0
    %v426 = vsel %vm190, %v380, 0
    %v429 = vsel %vm190, %v381, 0
    %v432 = vsel %vm190, %v382, 0
    %v435 = vsel %vm190, %v383, 0
    %v438 = vsel %vm190, %v384, 0
    %v441 = vsel %vm190, %v385, 0
    %443 = vmatprep.subr.bf16.mxu0 %v405
    %444 = vmatpush1.bf16.msra.mxu0 %v404
    %445 = vmatprep.subr.bf16.mxu0 %v407
    %446 = vmatpush1.bf16.msra.mxu0 %v406
    %447 = vmatprep.subr.bf16.mxu0 %v409
    %448 = vmatpush1.bf16.msra.mxu0 %v408
    %449 = vmatprep.subr.bf16.mxu0 0
    %450 = vmatpush1.bf16.msra.mxu0 0
    %451 = vmatprep.subr.bf16.mxu0 0
    %452 = vmatpush1.bf16.msra.mxu0 0
    %453 = vmatprep.subr.bf16.mxu0 0
    %454 = vmatpush1.bf16.msra.mxu0 0
    %455 = vmatprep.subr.bf16.mxu0 0
    %456 = vmatpush1.bf16.msra.mxu0 0
    %457 = vmatprep.subr.bf16.mxu0 0
    %458 = vmatpush1.bf16.msra.mxu0 0
    %459 = vmatprep.subr.bf16.mxu0 0
    %460 = vmatpush1.bf16.msra.mxu0 0
    %461 = vmatprep.subr.bf16.mxu0 0
    %462 = vmatpush1.bf16.msra.mxu0 0
    %463 = vmatprep.subr.bf16.mxu0 0
    %464 = vmatpush1.bf16.msra.mxu0 0
    %465 = vmatprep.subr.bf16.mxu0 0
    %466 = vmatpush1.bf16.msra.mxu0 0
    %467 = vmatprep.subr.bf16.mxu0 0
    %468 = vmatpush1.bf16.msra.mxu0 0
    %469 = vmatprep.subr.bf16.mxu0 0
    %470 = vmatpush1.bf16.msra.mxu0 0
    %471 = vmatprep.subr.bf16.mxu0 0
    %472 = vmatpush1.bf16.msra.mxu0 0
    %473 = vmatprep.subr.bf16.mxu0 0
    %474 = vmatpush1.bf16.msra.mxu0 0
    %475 = vmatprep.mubr.bf16.mxu0 0
    %476 = vmatmul.mubr.bf16.gmra.mrb[0].mxu0 %v417
    %v477 = vpop.f32.mrb[0].mxu0
    %v478 = vadd.f32 %v253, %v477
    %v479 = vpop.f32.mrb[0].mxu0
    %v480 = vadd.f32 %v255, %v479
    %v481 = vpop.f32.mrb[0].mxu0
    %v482 = vadd.f32 %v257, %v481
    %v483 = vpop.f32.mrb[0].mxu0
    %v484 = vadd.f32 %v259, %v483
    %485 = vmatprep.mubr.bf16.mxu0 0
    %486 = vmatmul.mubr.bf16.gmra.mrb[0].mxu0 %v420
    %v487 = vpop.f32.mrb[0].mxu0
    %v488 = vadd.f32 %v263, %v487
    %v489 = vpop.f32.mrb[0].mxu0
    %v490 = vadd.f32 %v265, %v489
    %v491 = vpop.f32.mrb[0].mxu0
    %v492 = vadd.f32 %v267, %v491
    %v493 = vpop.f32.mrb[0].mxu0
    %v494 = vadd.f32 %v269, %v493
    %495 = vmatprep.mubr.bf16.mxu0 0
    %496 = vmatmul.mubr.bf16.gmra.mrb[0].mxu0 %v423
    %v497 = vpop.f32.mrb[0].mxu0
    %v498 = vadd.f32 %v273, %v497
    %v499 = vpop.f32.mrb[0].mxu0
    %v500 = vadd.f32 %v275, %v499
    %v501 = vpop.f32.mrb[0].mxu0
    %v502 = vadd.f32 %v277, %v501
    %v503 = vpop.f32.mrb[0].mxu0
    %v504 = vadd.f32 %v279, %v503
    %505 = vmatprep.mubr.bf16.mxu0 0
    %506 = vmatmul.mubr.bf16.gmra.mrb[0].mxu0 %v426
    %v507 = vpop.f32.mrb[0].mxu0
    %v508 = vadd.f32 %v283, %v507
    %v509 = vpop.f32.mrb[0].mxu0
    %v510 = vadd.f32 %v285, %v509
    %v511 = vpop.f32.mrb[0].mxu0
    %v512 = vadd.f32 %v287, %v511
    %v513 = vpop.f32.mrb[0].mxu0
    %v514 = vadd.f32 %v289, %v513
    %515 = vmatprep.mubr.bf16.mxu0 0
    %516 = vmatmul.mubr.bf16.gmra.mrb[0].mxu0 %v429
    %v517 = vpop.f32.mrb[0].mxu0
    %v518 = vadd.f32 %v293, %v517
    %v519 = vpop.f32.mrb[0].mxu0
    %v520 = vadd.f32 %v295, %v519
    %v521 = vpop.f32.mrb[0].mxu0
    %v522 = vadd.f32 %v297, %v521
    %v523 = vpop.f32.mrb[0].mxu0
    %v524 = vadd.f32 %v299, %v523
    %525 = vmatprep.mubr.bf16.mxu0 0
    %526 = vmatmul.mubr.bf16.gmra.mrb[0].mxu0 %v432
    %v527 = vpop.f32.mrb[0].mxu0
    %v528 = vadd.f32 %v303, %v527
    %v529 = vpop.f32.mrb[0].mxu0
    %v530 = vadd.f32 %v305, %v529
    %v531 = vpop.f32.mrb[0].mxu0
    %v532 = vadd.f32 %v307, %v531
    %v533 = vpop.f32.mrb[0].mxu0
    %v534 = vadd.f32 %v309, %v533
    %535 = vmatprep.mubr.bf16.mxu0 0
    %536 = vmatmul.mubr.bf16.gmra.mrb[0].mxu0 %v435
    %v537 = vpop.f32.mrb[0].mxu0
    %v538 = vadd.f32 %v313, %v537
    %v539 = vpop.f32.mrb[0].mxu0
    %v540 = vadd.f32 %v315, %v539
    %v541 = vpop.f32.mrb[0].mxu0
    %v542 = vadd.f32 %v317, %v541
    %v543 = vpop.f32.mrb[0].mxu0
    %v544 = vadd.f32 %v319, %v543
    %545 = vmatprep.mubr.bf16.mxu0 0
    %546 = vmatmul.mubr.bf16.gmra.mrb[0].mxu0 %v438
    %v547 = vpop.f32.mrb[0].mxu0
    %v548 = vadd.f32 %v323, %v547
    %v549 = vpop.f32.mrb[0].mxu0
    %v550 = vadd.f32 %v325, %v549
    %v551 = vpop.f32.mrb[0].mxu0
    %v552 = vadd.f32 %v327, %v551
    %v553 = vpop.f32.mrb[0].mxu0
    %v554 = vadd.f32 %v329, %v553
    %555 = vmatprep.mubr.bf16.mxu0 0
    %556 = vmatmul.mubr.bf16.gmra.mrb[0].mxu0 %v441
    %v557 = vpop.f32.mrb[0].mxu0
    %v558 = vadd.f32 %v333, %v557
    %v559 = vpop.f32.mrb[0].mxu0
    %v560 = vadd.f32 %v335, %v559
    %v561 = vpop.f32.mrb[0].mxu0
    %v562 = vadd.f32 %v337, %v561
    %v563 = vpop.f32.mrb[0].mxu0
    %v564 = vadd.f32 %v339, %v563
    %565 = vdwg.mxu0
    %s566 = scalar_lea.vmem %s0, 144
    %v567 = vld [vmem:[%s566] sm:$0xf]
    %v568 = vld [vmem:[%s566 + $0x4] sm:$0xf]
    %v569 = vld [vmem:[%s566 + $0x8] sm:$0xf]
    %v570 = vld [vmem:[%s566 + $0xc] sm:$0xf]
    %v571 = vld [vmem:[%s566 + $0x10] sm:$0xf]
    %v572 = vld [vmem:[%s566 + $0x14] sm:$0xf]
    %v573 = vld [vmem:[%s566 + $0x18] sm:$0xf]
    %v574 = vld [vmem:[%s566 + $0x1c] sm:$0xf]
    %v575 = vld [vmem:[%s566 + $0x20] sm:$0xf]
    %v576 = vld [vmem:[%s566 + $0x24] sm:$0xf]
    %v577 = vld [vmem:[%s566 + $0x28] sm:$0xf]
    %v578 = vld [vmem:[%s566 + $0x2c] sm:$0xf]
    %v579 = vld [vmem:[%s566 + $0x30] sm:$0xf]
    %v580 = vld [vmem:[%s566 + $0x34] sm:$0xf]
    %v581 = vld [vmem:[%s566 + $0x38] sm:$0xf]
    %v582 = vld [vmem:[%s566 + $0x3c] sm:$0xf]
    %v583 = vld [vmem:[%s566 + $0x40] sm:$0xf]
    %v584 = vld [vmem:[%s566 + $0x44] sm:$0xf]
    %s585 = scalar_lea.vmem %s1, 96
    %v586 = vld [vmem:[%s585] sm:$0xff]
    %v587 = vld [vmem:[%s585 + $0x8] sm:$0xff]
    %v588 = vld [vmem:[%s585 + $0x10] sm:$0xff]
    %v589 = vld [vmem:[%s585 + $0x18] sm:$0xff]
    %v590 = vld [vmem:[%s585 + $0x20] sm:$0xff]
    %v591 = vld [vmem:[%s585 + $0x28] sm:$0xff]
    %v610 = vunpack.c.l.b16 %v567
    %v611 = vunpack.c.l.b16 %v568
    %v612 = vunpack.c.l.b16 %v569
    %v613 = vunpack.c.l.b16 %v570
    %v614 = vunpack.c.l.b16 %v571
    %v615 = vunpack.c.l.b16 %v572
    %v616 = vunpack.c.l.b16 %v573
    %v617 = vunpack.c.l.b16 %v574
    %v618 = vunpack.c.l.b16 %v575
    %v619 = vunpack.c.l.b16 %v576
    %v620 = vunpack.c.l.b16 %v577
    %v621 = vunpack.c.l.b16 %v578
    %v622 = vunpack.c.l.b16 %v579
    %v623 = vunpack.c.l.b16 %v580
    %v624 = vunpack.c.l.b16 %v581
    %v625 = vunpack.c.l.b16 %v582
    %v626 = vunpack.c.l.b16 %v583
    %v627 = vunpack.c.l.b16 %v584
    %v628 = vpack.c.b16 %v611, %v610
    %v629 = vpack.c.b16 %v613, %v612
    %v630 = vpack.c.b16 %v615, %v614
    %v631 = vpack.c.b16 %v617, %v616
    %v632 = vpack.c.b16 %v619, %v618
    %v633 = vpack.c.b16 %v621, %v620
    %v634 = vpack.c.b16 %v623, %v622
    %v635 = vpack.c.b16 %v625, %v624
    %v636 = vpack.c.b16 %v627, %v626
    %v643 = vunpack.c.l.b16 %v586
    %v644 = vunpack.c.h.b16 %v586
    %v645 = vunpack.c.l.b16 %v587
    %v646 = vunpack.c.h.b16 %v587
    %v647 = vunpack.c.l.b16 %v588
    %v648 = vunpack.c.h.b16 %v588
    %v649 = vunpack.c.l.b16 %v589
    %v650 = vunpack.c.h.b16 %v589
    %v651 = vunpack.c.l.b16 %v590
    %v652 = vunpack.c.h.b16 %v590
    %v653 = vunpack.c.l.b16 %v591
    %v654 = vunpack.c.h.b16 %v591
    %v655 = vpack.c.b16 %v645, %v643
    %v656 = vpack.c.b16 %v646, %v644
    %v657 = vpack.c.b16 %v649, %v647
    %v658 = vpack.c.b16 %v650, %v648
    %v659 = vpack.c.b16 %v653, %v651
    %v660 = vpack.c.b16 %v654, %v652
    %v668 = vsel %vm190, %v628, 0
    %v671 = vsel %vm190, %v629, 0
    %v674 = vsel %vm190, %v630, 0
    %v677 = vsel %vm190, %v631, 0
    %v680 = vsel %vm190, %v632, 0
    %v683 = vsel %vm190, %v633, 0
    %v686 = vsel %vm190, %v634, 0
    %v689 = vsel %vm190, %v635, 0
    %v692 = vsel %vm190, %v636, 0
    %694 = vmatprep.subr.bf16.mxu0 %v656
    %695 = vmatpush1.bf16.msra.mxu0 %v655
    %696 = vmatprep.subr.bf16.mxu0 %v658
    %697 = vmatpush1.bf16.msra.mxu0 %v657
    %698 = vmatprep.subr.bf16.mxu0 %v660
    %699 = vmatpush1.bf16.msra.mxu0 %v659
    %700 = vmatprep.subr.bf16.mxu0 0
    %701 = vmatpush1.bf16.msra.mxu0 0
    %702 = vmatprep.subr.bf16.mxu0 0
    %703 = vmatpush1.bf16.msra.mxu0 0
    %704 = vmatprep.subr.bf16.mxu0 0
    %705 = vmatpush1.bf16.msra.mxu0 0
    %706 = vmatprep.subr.bf16.mxu0 0
    %707 = vmatpush1.bf16.msra.mxu0 0
    %708 = vmatprep.subr.bf16.mxu0 0
    %709 = vmatpush1.bf16.msra.mxu0 0
    %710 = vmatprep.subr.bf16.mxu0 0
    %711 = vmatpush1.bf16.msra.mxu0 0
    %712 = vmatprep.subr.bf16.mxu0 0
    %713 = vmatpush1.bf16.msra.mxu0 0
    %714 = vmatprep.subr.bf16.mxu0 0
    %715 = vmatpush1.bf16.msra.mxu0 0
    %716 = vmatprep.subr.bf16.mxu0 0
    %717 = vmatpush1.bf16.msra.mxu0 0
    %718 = vmatprep.subr.bf16.mxu0 0
    %719 = vmatpush1.bf16.msra.mxu0 0
    %720 = vmatprep.subr.bf16.mxu0 0
    %721 = vmatpush1.bf16.msra.mxu0 0
    %722 = vmatprep.subr.bf16.mxu0 0
    %723 = vmatpush1.bf16.msra.mxu0 0
    %724 = vmatprep.subr.bf16.mxu0 0
    %725 = vmatpush1.bf16.msra.mxu0 0
    %726 = vmatprep.mubr.bf16.mxu0 0
    %727 = vmatmul.mubr.bf16.gmra.mrb[0].mxu0 %v668
    %v728 = vpop.f32.mrb[0].mxu0
    %v729 = vadd.f32 0.0, %v728
    %v730 = vpop.f32.mrb[0].mxu0
    %v731 = vadd.f32 0.0, %v730
    %v732 = vpop.f32.mrb[0].mxu0
    %v733 = vadd.f32 0.0, %v732
    %v734 = vpop.f32.mrb[0].mxu0
    %v735 = vadd.f32 0.0, %v734
    %736 = vmatprep.mubr.bf16.mxu0 0
    %737 = vmatmul.mubr.bf16.gmra.mrb[0].mxu0 %v671
    %v738 = vpop.f32.mrb[0].mxu0
    %v739 = vadd.f32 0.0, %v738
    %v740 = vpop.f32.mrb[0].mxu0
    %v741 = vadd.f32 0.0, %v740
    %v742 = vpop.f32.mrb[0].mxu0
    %v743 = vadd.f32 0.0, %v742
    %v744 = vpop.f32.mrb[0].mxu0
    %v745 = vadd.f32 0.0, %v744
    %746 = vmatprep.mubr.bf16.mxu0 0
    %747 = vmatmul.mubr.bf16.gmra.mrb[0].mxu0 %v674
    %v748 = vpop.f32.mrb[0].mxu0
    %v749 = vadd.f32 0.0, %v748
    %v750 = vpop.f32.mrb[0].mxu0
    %v751 = vadd.f32 0.0, %v750
    %v752 = vpop.f32.mrb[0].mxu0
    %v753 = vadd.f32 0.0, %v752
    %v754 = vpop.f32.mrb[0].mxu0
    %v755 = vadd.f32 0.0, %v754
    %756 = vmatprep.mubr.bf16.mxu0 0
    %757 = vmatmul.mubr.bf16.gmra.mrb[0].mxu0 %v677
    %v758 = vpop.f32.mrb[0].mxu0
    %v759 = vadd.f32 0.0, %v758
    %v760 = vpop.f32.mrb[0].mxu0
    %v761 = vadd.f32 0.0, %v760
    %v762 = vpop.f32.mrb[0].mxu0
    %v763 = vadd.f32 0.0, %v762
    %v764 = vpop.f32.mrb[0].mxu0
    %v765 = vadd.f32 0.0, %v764
    %766 = vmatprep.mubr.bf16.mxu0 0
    %767 = vmatmul.mubr.bf16.gmra.mrb[0].mxu0 %v680
    %v768 = vpop.f32.mrb[0].mxu0
    %v769 = vadd.f32 0.0, %v768
    %v770 = vpop.f32.mrb[0].mxu0
    %v771 = vadd.f32 0.0, %v770
    %v772 = vpop.f32.mrb[0].mxu0
    %v773 = vadd.f32 0.0, %v772
    %v774 = vpop.f32.mrb[0].mxu0
    %v775 = vadd.f32 0.0, %v774
    %776 = vmatprep.mubr.bf16.mxu0 0
    %777 = vmatmul.mubr.bf16.gmra.mrb[0].mxu0 %v683
    %v778 = vpop.f32.mrb[0].mxu0
    %v779 = vadd.f32 0.0, %v778
    %v780 = vpop.f32.mrb[0].mxu0
    %v781 = vadd.f32 0.0, %v780
    %v782 = vpop.f32.mrb[0].mxu0
    %v783 = vadd.f32 0.0, %v782
    %v784 = vpop.f32.mrb[0].mxu0
    %v785 = vadd.f32 0.0, %v784
    %786 = vmatprep.mubr.bf16.mxu0 0
    %787 = vmatmul.mubr.bf16.gmra.mrb[0].mxu0 %v686
    %v788 = vpop.f32.mrb[0].mxu0
    %v789 = vadd.f32 0.0, %v788
    %v790 = vpop.f32.mrb[0].mxu0
    %v791 = vadd.f32 0.0, %v790
    %v792 = vpop.f32.mrb[0].mxu0
    %v793 = vadd.f32 0.0, %v792
    %v794 = vpop.f32.mrb[0].mxu0
    %v795 = vadd.f32 0.0, %v794
    %796 = vmatprep.mubr.bf16.mxu0 0
    %797 = vmatmul.mubr.bf16.gmra.mrb[0].mxu0 %v689
    %v798 = vpop.f32.mrb[0].mxu0
    %v799 = vadd.f32 0.0, %v798
    %v800 = vpop.f32.mrb[0].mxu0
    %v801 = vadd.f32 0.0, %v800
    %v802 = vpop.f32.mrb[0].mxu0
    %v803 = vadd.f32 0.0, %v802
    %v804 = vpop.f32.mrb[0].mxu0
    %v805 = vadd.f32 0.0, %v804
    %806 = vmatprep.mubr.bf16.mxu0 0
    %807 = vmatmul.mubr.bf16.gmra.mrb[0].mxu0 %v692
    %v808 = vpop.f32.mrb[0].mxu0
    %v809 = vadd.f32 0.0, %v808
    %v810 = vpop.f32.mrb[0].mxu0
    %v811 = vadd.f32 0.0, %v810
    %v812 = vpop.f32.mrb[0].mxu0
    %v813 = vadd.f32 0.0, %v812
    %v814 = vpop.f32.mrb[0].mxu0
    %v815 = vadd.f32 0.0, %v814
    %816 = vdwg.mxu0
    %v817 = vadd.f32 %v478, %v729
    %v818 = vadd.f32 %v480, %v731
    %v819 = vadd.f32 %v482, %v733
    %v820 = vadd.f32 %v484, %v735
    %v821 = vadd.f32 %v488, %v739
    %v822 = vadd.f32 %v490, %v741
    %v823 = vadd.f32 %v492, %v743
    %v824 = vadd.f32 %v494, %v745
    %v825 = vadd.f32 %v498, %v749
    %v826 = vadd.f32 %v500, %v751
    %v827 = vadd.f32 %v502, %v753
    %v828 = vadd.f32 %v504, %v755
    %v829 = vadd.f32 %v508, %v759
    %v830 = vadd.f32 %v510, %v761
    %v831 = vadd.f32 %v512, %v763
    %v832 = vadd.f32 %v514, %v765
    %v833 = vadd.f32 %v518, %v769
    %v834 = vadd.f32 %v520, %v771
    %v835 = vadd.f32 %v522, %v773
    %v836 = vadd.f32 %v524, %v775
    %v837 = vadd.f32 %v528, %v779
    %v838 = vadd.f32 %v530, %v781
    %v839 = vadd.f32 %v532, %v783
    %v840 = vadd.f32 %v534, %v785
    %v841 = vadd.f32 %v538, %v789
    %v842 = vadd.f32 %v540, %v791
    %v843 = vadd.f32 %v542, %v793
    %v844 = vadd.f32 %v544, %v795
    %v845 = vadd.f32 %v548, %v799
    %v846 = vadd.f32 %v550, %v801
    %v847 = vadd.f32 %v552, %v803
    %v848 = vadd.f32 %v554, %v805
    %v849 = vadd.f32 %v558, %v809
    %v850 = vadd.f32 %v560, %v811
    %v851 = vadd.f32 %v562, %v813
    %v852 = vadd.f32 %v564, %v815
    %v853 = vld [vmem:[%s2] sm:$0x3]
    %v855 = vlaneseq
    %v856 = vshrl.u32 %v855, 7
    %v857 = vsub.s32 0, %v856
    %v858 = vrot.slane %v853, %v857
    %v859 = vlaneseq
    %v860 = vshrl.u32 %v859, 7
    %v861 = vsub.s32 1, %v860
    %v862 = vrot.slane %v853, %v861
    %v865 = vadd.f32 %v817, %v858
    %v866 = vadd.f32 %v818, %v862
    %v867 = vadd.f32 %v819, %v858
    %v868 = vadd.f32 %v820, %v862
    %v869 = vadd.f32 %v821, %v858
    %v870 = vadd.f32 %v822, %v862
    %v871 = vadd.f32 %v823, %v858
    %v872 = vadd.f32 %v824, %v862
    %v873 = vadd.f32 %v825, %v858
    %v874 = vadd.f32 %v826, %v862
    %v875 = vadd.f32 %v827, %v858
    %v876 = vadd.f32 %v828, %v862
    %v877 = vadd.f32 %v829, %v858
    %v878 = vadd.f32 %v830, %v862
    %v879 = vadd.f32 %v831, %v858
    %v880 = vadd.f32 %v832, %v862
    %v881 = vadd.f32 %v833, %v858
    %v882 = vadd.f32 %v834, %v862
    %v883 = vadd.f32 %v835, %v858
    %v884 = vadd.f32 %v836, %v862
    %v885 = vadd.f32 %v837, %v858
    %v886 = vadd.f32 %v838, %v862
    %v887 = vadd.f32 %v839, %v858
    %v888 = vadd.f32 %v840, %v862
    %v889 = vadd.f32 %v841, %v858
    %v890 = vadd.f32 %v842, %v862
    %v891 = vadd.f32 %v843, %v858
    %v892 = vadd.f32 %v844, %v862
    %v893 = vadd.f32 %v845, %v858
    %v894 = vadd.f32 %v846, %v862
    %v895 = vadd.f32 %v847, %v858
    %v896 = vadd.f32 %v848, %v862
    %v897 = vadd.f32 %v849, %v858
    %v898 = vadd.f32 %v850, %v862
    %v899 = vadd.f32 %v851, %v858
    %v900 = vadd.f32 %v852, %v862
    %v901 = vmax.f32 %v865, 0.0
    %v902 = vmax.f32 %v866, 0.0
    %v903 = vmax.f32 %v867, 0.0
    %v904 = vmax.f32 %v868, 0.0
    %v905 = vmax.f32 %v869, 0.0
    %v906 = vmax.f32 %v870, 0.0
    %v907 = vmax.f32 %v871, 0.0
    %v908 = vmax.f32 %v872, 0.0
    %v909 = vmax.f32 %v873, 0.0
    %v910 = vmax.f32 %v874, 0.0
    %v911 = vmax.f32 %v875, 0.0
    %v912 = vmax.f32 %v876, 0.0
    %v913 = vmax.f32 %v877, 0.0
    %v914 = vmax.f32 %v878, 0.0
    %v915 = vmax.f32 %v879, 0.0
    %v916 = vmax.f32 %v880, 0.0
    %v917 = vmax.f32 %v881, 0.0
    %v918 = vmax.f32 %v882, 0.0
    %v919 = vmax.f32 %v883, 0.0
    %v920 = vmax.f32 %v884, 0.0
    %v921 = vmax.f32 %v885, 0.0
    %v922 = vmax.f32 %v886, 0.0
    %v923 = vmax.f32 %v887, 0.0
    %v924 = vmax.f32 %v888, 0.0
    %v925 = vmax.f32 %v889, 0.0
    %v926 = vmax.f32 %v890, 0.0
    %v927 = vmax.f32 %v891, 0.0
    %v928 = vmax.f32 %v892, 0.0
    %v929 = vmax.f32 %v893, 0.0
    %v930 = vmax.f32 %v894, 0.0
    %v931 = vmax.f32 %v895, 0.0
    %v932 = vmax.f32 %v896, 0.0
    %v933 = vmax.f32 %v897, 0.0
    %v934 = vmax.f32 %v898, 0.0
    %v935 = vmax.f32 %v899, 0.0
    %v936 = vmax.f32 %v900, 0.0
    %v937 = vld [vmem:[%s3] sm:$0xff]
    %v938 = vpack.c.bf16 %v903, %v901
    %v939 = vpack.c.bf16 %v904, %v902
    %v940 = vpack.c.bf16 %v907, %v905
    %v941 = vpack.c.bf16 %v908, %v906
    %v942 = vpack.c.bf16 %v911, %v909
    %v943 = vpack.c.bf16 %v912, %v910
    %v944 = vpack.c.bf16 %v915, %v913
    %v945 = vpack.c.bf16 %v916, %v914
    %v946 = vpack.c.bf16 %v919, %v917
    %v947 = vpack.c.bf16 %v920, %v918
    %v948 = vpack.c.bf16 %v923, %v921
    %v949 = vpack.c.bf16 %v924, %v922
    %v950 = vpack.c.bf16 %v927, %v925
    %v951 = vpack.c.bf16 %v928, %v926
    %v952 = vpack.c.bf16 %v931, %v929
    %v953 = vpack.c.bf16 %v932, %v930
    %v954 = vpack.c.bf16 %v935, %v933
    %v955 = vpack.c.bf16 %v936, %v934
    %v957 = vunpack.c.l.b16 %v937
    %v958 = vunpack.c.h.b16 %v937
    %v959 = vpack.c.b16 %v957, %v957
    %v960 = vpack.c.b16 %v958, %v958
    %vm962 = vcmask 130048
    %v964 = vsel %vm962, %v960, 0
    %966 = vmatprep.subr.bf16.mxu0 %v939
    %967 = vmatpush1.bf16.msra.mxu0 %v938
    %968 = vmatprep.subr.bf16.mxu0 %v941
    %969 = vmatpush1.bf16.msra.mxu0 %v940
    %970 = vmatprep.subr.bf16.mxu0 %v943
    %971 = vmatpush1.bf16.msra.mxu0 %v942
    %972 = vmatprep.subr.bf16.mxu0 %v945
    %973 = vmatpush1.bf16.msra.mxu0 %v944
    %974 = vmatprep.subr.bf16.mxu0 %v947
    %975 = vmatpush1.bf16.msra.mxu0 %v946
    %976 = vmatprep.subr.bf16.mxu0 %v949
    %977 = vmatpush1.bf16.msra.mxu0 %v948
    %978 = vmatprep.subr.bf16.mxu0 %v951
    %979 = vmatpush1.bf16.msra.mxu0 %v950
    %980 = vmatprep.subr.bf16.mxu0 %v953
    %981 = vmatpush1.bf16.msra.mxu0 %v952
    %982 = vmatprep.subr.bf16.mxu0 %v955
    %983 = vmatpush1.bf16.msra.mxu0 %v954
    %984 = vmatprep.subr.bf16.mxu0 0
    %985 = vmatpush1.bf16.msra.mxu0 0
    %986 = vmatprep.subr.bf16.mxu0 0
    %987 = vmatpush1.bf16.msra.mxu0 0
    %988 = vmatprep.subr.bf16.mxu0 0
    %989 = vmatpush1.bf16.msra.mxu0 0
    %990 = vmatprep.subr.bf16.mxu0 0
    %991 = vmatpush1.bf16.msra.mxu0 0
    %992 = vmatprep.subr.bf16.mxu0 0
    %993 = vmatpush1.bf16.msra.mxu0 0
    %994 = vmatprep.subr.bf16.mxu0 0
    %995 = vmatpush1.bf16.msra.mxu0 0
    %996 = vmatprep.subr.bf16.mxu0 0
    %997 = vmatpush1.bf16.msra.mxu0 0
    %998 = vmatprep.mubr.bf16.mxu0 %v964
    %999 = vmatmul.mubr.bf16.gmra.mrb[0].mxu0 %v959
    %v1000 = vpop.f32.mrb[0].mxu0
    %v1001 = vadd.f32 0.0, %v1000
    %v1002 = vpop.f32.mrb[0].mxu0
    %v1003 = vadd.f32 0.0, %v1002
    %v1004 = vpop.f32.mrb[0].mxu0
    %v1005 = vpop.f32.mrb[0].mxu0
    %1006 = vdwg.mxu0
    %v1007 = vpack.c.bf16 %v1001, %v1001
    %v1008 = vpack.c.bf16 %v1003, %v1003
    %v1009 = vld [vmem:[%s4] sm:$0xf]
    %v1010 = vld [vmem:[%s4 + $0x4] sm:$0xf]
    %v1011 = vld [vmem:[%s4 + $0x8] sm:$0xf]
    %v1012 = vld [vmem:[%s4 + $0xc] sm:$0xf]
    %v1013 = vld [vmem:[%s4 + $0x10] sm:$0xf]
    %v1014 = vld [vmem:[%s4 + $0x14] sm:$0xf]
    %v1015 = vld [vmem:[%s4 + $0x18] sm:$0xf]
    %v1016 = vld [vmem:[%s4 + $0x1c] sm:$0xf]
    %v1017 = vld [vmem:[%s4 + $0x20] sm:$0xf]
    %v1018 = vld [vmem:[%s4 + $0x24] sm:$0xf]
    %v1019 = vld [vmem:[%s4 + $0x28] sm:$0xf]
    %v1020 = vld [vmem:[%s4 + $0x2c] sm:$0xf]
    %v1021 = vld [vmem:[%s4 + $0x30] sm:$0xf]
    %v1022 = vld [vmem:[%s4 + $0x34] sm:$0xf]
    %v1023 = vld [vmem:[%s4 + $0x38] sm:$0xf]
    %v1024 = vld [vmem:[%s4 + $0x3c] sm:$0xf]
    %v1025 = vld [vmem:[%s4 + $0x40] sm:$0xf]
    %v1026 = vld [vmem:[%s4 + $0x44] sm:$0xf]
    %v1027 = vld [vmem:[%s4 + $0x48] sm:$0xf]
    %v1028 = vld [vmem:[%s4 + $0x4c] sm:$0xf]
    %v1029 = vld [vmem:[%s4 + $0x50] sm:$0xf]
    %v1030 = vld [vmem:[%s4 + $0x54] sm:$0xf]
    %v1031 = vld [vmem:[%s4 + $0x58] sm:$0xf]
    %v1032 = vld [vmem:[%s4 + $0x5c] sm:$0xf]
    %v1033 = vld [vmem:[%s4 + $0x60] sm:$0xf]
    %v1034 = vld [vmem:[%s4 + $0x64] sm:$0xf]
    %v1035 = vld [vmem:[%s4 + $0x68] sm:$0xf]
    %v1036 = vld [vmem:[%s4 + $0x6c] sm:$0xf]
    %v1037 = vld [vmem:[%s4 + $0x70] sm:$0xf]
    %v1038 = vld [vmem:[%s4 + $0x74] sm:$0xf]
    %v1039 = vld [vmem:[%s4 + $0x78] sm:$0xf]
    %v1040 = vld [vmem:[%s4 + $0x7c] sm:$0xf]
    %v1041 = vld [vmem:[%s5] sm:$0x1]
    %v1043 = vlaneseq
    %v1044 = vshrl.u32 %v1043, 7
    %v1045 = vsub.s32 0, %v1044
    %v1046 = vrot.slane %v1041, %v1045
    %v1080 = vunpack.c.l.b16 %v1009
    %v1081 = vunpack.c.l.b16 %v1010
    %v1082 = vunpack.c.l.b16 %v1011
    %v1083 = vunpack.c.l.b16 %v1012
    %v1084 = vunpack.c.l.b16 %v1013
    %v1085 = vunpack.c.l.b16 %v1014
    %v1086 = vunpack.c.l.b16 %v1015
    %v1087 = vunpack.c.l.b16 %v1016
    %v1088 = vunpack.c.l.b16 %v1017
    %v1089 = vunpack.c.l.b16 %v1018
    %v1090 = vunpack.c.l.b16 %v1019
    %v1091 = vunpack.c.l.b16 %v1020
    %v1092 = vunpack.c.l.b16 %v1021
    %v1093 = vunpack.c.l.b16 %v1022
    %v1094 = vunpack.c.l.b16 %v1023
    %v1095 = vunpack.c.l.b16 %v1024
    %v1096 = vunpack.c.l.b16 %v1025
    %v1097 = vunpack.c.l.b16 %v1026
    %v1098 = vunpack.c.l.b16 %v1027
    %v1099 = vunpack.c.l.b16 %v1028
    %v1100 = vunpack.c.l.b16 %v1029
    %v1101 = vunpack.c.l.b16 %v1030
    %v1102 = vunpack.c.l.b16 %v1031
    %v1103 = vunpack.c.l.b16 %v1032
    %v1104 = vunpack.c.l.b16 %v1033
    %v1105 = vunpack.c.l.b16 %v1034
    %v1106 = vunpack.c.l.b16 %v1035
    %v1107 = vunpack.c.l.b16 %v1036
    %v1108 = vunpack.c.l.b16 %v1037
    %v1109 = vunpack.c.l.b16 %v1038
    %v1110 = vunpack.c.l.b16 %v1039
    %v1111 = vunpack.c.l.b16 %v1040
    %v1112 = vpack.c.b16 %v1081, %v1080
    %v1113 = vpack.c.b16 %v1083, %v1082
    %v1114 = vpack.c.b16 %v1085, %v1084
    %v1115 = vpack.c.b16 %v1087, %v1086
    %v1116 = vpack.c.b16 %v1089, %v1088
    %v1117 = vpack.c.b16 %v1091, %v1090
    %v1118 = vpack.c.b16 %v1093, %v1092
    %v1119 = vpack.c.b16 %v1095, %v1094
    %v1120 = vpack.c.b16 %v1097, %v1096
    %v1121 = vpack.c.b16 %v1099, %v1098
    %v1122 = vpack.c.b16 %v1101, %v1100
    %v1123 = vpack.c.b16 %v1103, %v1102
    %v1124 = vpack.c.b16 %v1105, %v1104
    %v1125 = vpack.c.b16 %v1107, %v1106
    %v1126 = vpack.c.b16 %v1109, %v1108
    %v1127 = vpack.c.b16 %v1111, %v1110
    %1144 = vmatprep.subr.bf16.mxu0 0
    %1145 = vmatpush1.bf16.msra.mxu0 %v1112
    %1146 = vmatprep.subr.bf16.mxu0 0
    %1147 = vmatpush1.bf16.msra.mxu0 %v1113
    %1148 = vmatprep.subr.bf16.mxu0 0
    %1149 = vmatpush1.bf16.msra.mxu0 %v1114
    %1150 = vmatprep.subr.bf16.mxu0 0
    %1151 = vmatpush1.bf16.msra.mxu0 %v1115
    %1152 = vmatprep.subr.bf16.mxu0 0
    %1153 = vmatpush1.bf16.msra.mxu0 %v1116
    %1154 = vmatprep.subr.bf16.mxu0 0
    %1155 = vmatpush1.bf16.msra.mxu0 %v1117
    %1156 = vmatprep.subr.bf16.mxu0 0
    %1157 = vmatpush1.bf16.msra.mxu0 %v1118
    %1158 = vmatprep.subr.bf16.mxu0 0
    %1159 = vmatpush1.bf16.msra.mxu0 %v1119
    %1160 = vmatprep.subr.bf16.mxu0 0
    %1161 = vmatpush1.bf16.msra.mxu0 %v1120
    %1162 = vmatprep.subr.bf16.mxu0 0
    %1163 = vmatpush1.bf16.msra.mxu0 %v1121
    %1164 = vmatprep.subr.bf16.mxu0 0
    %1165 = vmatpush1.bf16.msra.mxu0 %v1122
    %1166 = vmatprep.subr.bf16.mxu0 0
    %1167 = vmatpush1.bf16.msra.mxu0 %v1123
    %1168 = vmatprep.subr.bf16.mxu0 0
    %1169 = vmatpush1.bf16.msra.mxu0 %v1124
    %1170 = vmatprep.subr.bf16.mxu0 0
    %1171 = vmatpush1.bf16.msra.mxu0 %v1125
    %1172 = vmatprep.subr.bf16.mxu0 0
    %1173 = vmatpush1.bf16.msra.mxu0 %v1126
    %1174 = vmatprep.subr.bf16.mxu0 0
    %1175 = vmatpush1.bf16.msra.mxu0 %v1127
    %1176 = vmatprep.mubr.bf16.mxu0 %v1008
    %1177 = vmatmul.mubr.bf16.gmra.mrb[0].mxu0 %v1007
    %v1178 = vpop.f32.mrb[0].mxu0
    %v1179 = vadd.f32 %v1046, %v1178
    %v1180 = vpop.f32.mrb[0].mxu0
    %v1181 = vpop.f32.mrb[0].mxu0
    %v1182 = vpop.f32.mrb[0].mxu0
    %1183 = vdwg.mxu0
    %v1184 = vpack.c.bf16 %v1179, %v1179
    %v1185 = vld [vmem:[%s6] sm:$0xff]
    %v1186 = vld [vmem:[%s6 + $0x8] sm:$0xf]
    %v1187 = vld [vmem:[%s6 + $0xc] sm:$0xff]
    %v1188 = vld [vmem:[%s6 + $0x14] sm:$0xf]
    %v1189 = vld [vmem:[%s6 + $0x18] sm:$0xff]
    %v1190 = vld [vmem:[%s6 + $0x20] sm:$0xf]
    %v1191 = vld [vmem:[%s6 + $0x24] sm:$0xff]
    %v1192 = vld [vmem:[%s6 + $0x2c] sm:$0xf]
    %v1193 = vld [vmem:[%s6 + $0x30] sm:$0xff]
    %v1194 = vld [vmem:[%s6 + $0x38] sm:$0xf]
    %v1195 = vld [vmem:[%s6 + $0x3c] sm:$0xff]
    %v1196 = vld [vmem:[%s6 + $0x44] sm:$0xf]
    %v1197 = vld [vmem:[%s6 + $0x48] sm:$0xff]
    %v1198 = vld [vmem:[%s6 + $0x50] sm:$0xf]
    %v1199 = vld [vmem:[%s6 + $0x54] sm:$0xff]
    %v1200 = vld [vmem:[%s6 + $0x5c] sm:$0xf]
    %v1201 = vld [vmem:[%s6 + $0x60] sm:$0xff]
    %v1202 = vld [vmem:[%s6 + $0x68] sm:$0xf]
    %v1203 = vld [vmem:[%s6 + $0x6c] sm:$0xff]
    %v1204 = vld [vmem:[%s6 + $0x74] sm:$0xf]
    %v1205 = vld [vmem:[%s6 + $0x78] sm:$0xff]
    %v1206 = vld [vmem:[%s6 + $0x80] sm:$0xf]
    %v1207 = vld [vmem:[%s6 + $0x84] sm:$0xff]
    %v1208 = vld [vmem:[%s6 + $0x8c] sm:$0xf]
    %v1209 = vld [vmem:[%s6 + $0x90] sm:$0xff]
    %v1210 = vld [vmem:[%s6 + $0x98] sm:$0xf]
    %v1211 = vld [vmem:[%s6 + $0x9c] sm:$0xff]
    %v1212 = vld [vmem:[%s6 + $0xa4] sm:$0xf]
    %v1213 = vld [vmem:[%s6 + $0xa8] sm:$0xff]
    %v1214 = vld [vmem:[%s6 + $0xb0] sm:$0xf]
    %v1215 = vld [vmem:[%s6 + $0xb4] sm:$0xff]
    %v1216 = vld [vmem:[%s6 + $0xbc] sm:$0xf]
    %v1217 = vld [vmem:[%s7] sm:$0x7]
    %v1219 = vlaneseq
    %v1220 = vshrl.u32 %v1219, 7
    %v1221 = vsub.s32 0, %v1220
    %v1222 = vrot.slane %v1217, %v1221
    %v1223 = vlaneseq
    %v1224 = vshrl.u32 %v1223, 7
    %v1225 = vsub.s32 1, %v1224
    %v1226 = vrot.slane %v1217, %v1225
    %v1227 = vlaneseq
    %v1228 = vshrl.u32 %v1227, 7
    %v1229 = vsub.s32 2, %v1228
    %v1230 = vrot.slane %v1217, %v1229
    %v1266 = vunpack.c.l.b16 %v1185
    %v1267 = vunpack.c.h.b16 %v1185
    %v1268 = vunpack.c.l.b16 %v1186
    %v1269 = vunpack.c.l.b16 %v1187
    %v1270 = vunpack.c.h.b16 %v1187
    %v1271 = vunpack.c.l.b16 %v1188
    %v1272 = vunpack.c.l.b16 %v1189
    %v1273 = vunpack.c.h.b16 %v1189
    %v1274 = vunpack.c.l.b16 %v1190
    %v1275 = vunpack.c.l.b16 %v1191
    %v1276 = vunpack.c.h.b16 %v1191
    %v1277 = vunpack.c.l.b16 %v1192
    %v1278 = vunpack.c.l.b16 %v1193
    %v1279 = vunpack.c.h.b16 %v1193
    %v1280 = vunpack.c.l.b16 %v1194
    %v1281 = vunpack.c.l.b16 %v1195
    %v1282 = vunpack.c.h.b16 %v1195
    %v1283 = vunpack.c.l.b16 %v1196
    %v1284 = vunpack.c.l.b16 %v1197
    %v1285 = vunpack.c.h.b16 %v1197
    %v1286 = vunpack.c.l.b16 %v1198
    %v1287 = vunpack.c.l.b16 %v1199
    %v1288 = vunpack.c.h.b16 %v1199
    %v1289 = vunpack.c.l.b16 %v1200
    %v1290 = vunpack.c.l.b16 %v1201
    %v1291 = vunpack.c.h.b16 %v1201
    %v1292 = vunpack.c.l.b16 %v1202
    %v1293 = vunpack.c.l.b16 %v1203
    %v1294 = vunpack.c.h.b16 %v1203
    %v1295 = vunpack.c.l.b16 %v1204
    %v1296 = vunpack.c.l.b16 %v1205
    %v1297 = vunpack.c.h.b16 %v1205
    %v1298 = vunpack.c.l.b16 %v1206
    %v1299 = vunpack.c.l.b16 %v1207
    %v1300 = vunpack.c.h.b16 %v1207
    %v1301 = vunpack.c.l.b16 %v1208
    %v1302 = vunpack.c.l.b16 %v1209
    %v1303 = vunpack.c.h.b16 %v1209
    %v1304 = vunpack.c.l.b16 %v1210
    %v1305 = vunpack.c.l.b16 %v1211
    %v1306 = vunpack.c.h.b16 %v1211
    %v1307 = vunpack.c.l.b16 %v1212
    %v1308 = vunpack.c.l.b16 %v1213
    %v1309 = vunpack.c.h.b16 %v1213
    %v1310 = vunpack.c.l.b16 %v1214
    %v1311 = vunpack.c.l.b16 %v1215
    %v1312 = vunpack.c.h.b16 %v1215
    %v1313 = vunpack.c.l.b16 %v1216
    %v1314 = vpack.c.b16 %v1269, %v1266
    %v1315 = vpack.c.b16 %v1270, %v1267
    %v1316 = vpack.c.b16 %v1271, %v1268
    %v1317 = vpack.c.b16 %v1275, %v1272
    %v1318 = vpack.c.b16 %v1276, %v1273
    %v1319 = vpack.c.b16 %v1277, %v1274
    %v1320 = vpack.c.b16 %v1281, %v1278
    %v1321 = vpack.c.b16 %v1282, %v1279
    %v1322 = vpack.c.b16 %v1283, %v1280
    %v1323 = vpack.c.b16 %v1287, %v1284
    %v1324 = vpack.c.b16 %v1288, %v1285
    %v1325 = vpack.c.b16 %v1289, %v1286
    %v1326 = vpack.c.b16 %v1293, %v1290
    %v1327 = vpack.c.b16 %v1294, %v1291
    %v1328 = vpack.c.b16 %v1295, %v1292
    %v1329 = vpack.c.b16 %v1299, %v1296
    %v1330 = vpack.c.b16 %v1300, %v1297
    %v1331 = vpack.c.b16 %v1301, %v1298
    %v1332 = vpack.c.b16 %v1305, %v1302
    %v1333 = vpack.c.b16 %v1306, %v1303
    %v1334 = vpack.c.b16 %v1307, %v1304
    %v1335 = vpack.c.b16 %v1311, %v1308
    %v1336 = vpack.c.b16 %v1312, %v1309
    %v1337 = vpack.c.b16 %v1313, %v1310
    %1362 = vmatprep.subr.bf16.mxu0 %v1315
    %1363 = vmatpush1.bf16.msra.mxu0 %v1314
    %1364 = vmatprep.subr.bf16.mxu0 %v1318
    %1365 = vmatpush1.bf16.msra.mxu0 %v1317
    %1366 = vmatprep.subr.bf16.mxu0 %v1321
    %1367 = vmatpush1.bf16.msra.mxu0 %v1320
    %1368 = vmatprep.subr.bf16.mxu0 %v1324
    %1369 = vmatpush1.bf16.msra.mxu0 %v1323
    %1370 = vmatprep.subr.bf16.mxu0 %v1327
    %1371 = vmatpush1.bf16.msra.mxu0 %v1326
    %1372 = vmatprep.subr.bf16.mxu0 %v1330
    %1373 = vmatpush1.bf16.msra.mxu0 %v1329
    %1374 = vmatprep.subr.bf16.mxu0 %v1333
    %1375 = vmatpush1.bf16.msra.mxu0 %v1332
    %1376 = vmatprep.subr.bf16.mxu0 %v1336
    %1377 = vmatpush1.bf16.msra.mxu0 %v1335
    %1378 = vmatprep.subr.bf16.mxu0 0
    %1379 = vmatpush1.bf16.msra.mxu0 0
    %1380 = vmatprep.subr.bf16.mxu0 0
    %1381 = vmatpush1.bf16.msra.mxu0 0
    %1382 = vmatprep.subr.bf16.mxu0 0
    %1383 = vmatpush1.bf16.msra.mxu0 0
    %1384 = vmatprep.subr.bf16.mxu0 0
    %1385 = vmatpush1.bf16.msra.mxu0 0
    %1386 = vmatprep.subr.bf16.mxu0 0
    %1387 = vmatpush1.bf16.msra.mxu0 0
    %1388 = vmatprep.subr.bf16.mxu0 0
    %1389 = vmatpush1.bf16.msra.mxu0 0
    %1390 = vmatprep.subr.bf16.mxu0 0
    %1391 = vmatpush1.bf16.msra.mxu0 0
    %1392 = vmatprep.subr.bf16.mxu0 0
    %1393 = vmatpush1.bf16.msra.mxu0 0
    %1394 = vmatprep.mubr.bf16.mxu0 0
    %1395 = vmatmul.mubr.bf16.gmra.mrb[0].mxu0 %v1184
    %v1396 = vpop.f32.mrb[0].mxu0
    %v1397 = vadd.f32 %v1222, %v1396
    %v1398 = vpop.f32.mrb[0].mxu0
    %v1399 = vadd.f32 %v1226, %v1398
    %v1400 = vpop.f32.mrb[0].mxu0
    %v1401 = vpop.f32.mrb[0].mxu0
    %1402 = vdwg.mxu0
    %1403 = vmatprep.subr.bf16.mxu0 0
    %1404 = vmatpush1.bf16.msra.mxu0 %v1316
    %1405 = vmatprep.subr.bf16.mxu0 0
    %1406 = vmatpush1.bf16.msra.mxu0 %v1319
    %1407 = vmatprep.subr.bf16.mxu0 0
    %1408 = vmatpush1.bf16.msra.mxu0 %v1322
    %1409 = vmatprep.subr.bf16.mxu0 0
    %1410 = vmatpush1.bf16.msra.mxu0 %v1325
    %1411 = vmatprep.subr.bf16.mxu0 0
    %1412 = vmatpush1.bf16.msra.mxu0 %v1328
    %1413 = vmatprep.subr.bf16.mxu0 0
    %1414 = vmatpush1.bf16.msra.mxu0 %v1331
    %1415 = vmatprep.subr.bf16.mxu0 0
    %1416 = vmatpush1.bf16.msra.mxu0 %v1334
    %1417 = vmatprep.subr.bf16.mxu0 0
    %1418 = vmatpush1.bf16.msra.mxu0 %v1337
    %1419 = vmatprep.subr.bf16.mxu0 0
    %1420 = vmatpush1.bf16.msra.mxu0 0
    %1421 = vmatprep.subr.bf16.mxu0 0
    %1422 = vmatpush1.bf16.msra.mxu0 0
    %1423 = vmatprep.subr.bf16.mxu0 0
    %1424 = vmatpush1.bf16.msra.mxu0 0
    %1425 = vmatprep.subr.bf16.mxu0 0
    %1426 = vmatpush1.bf16.msra.mxu0 0
    %1427 = vmatprep.subr.bf16.mxu0 0
    %1428 = vmatpush1.bf16.msra.mxu0 0
    %1429 = vmatprep.subr.bf16.mxu0 0
    %1430 = vmatpush1.bf16.msra.mxu0 0
    %1431 = vmatprep.subr.bf16.mxu0 0
    %1432 = vmatpush1.bf16.msra.mxu0 0
    %1433 = vmatprep.subr.bf16.mxu0 0
    %1434 = vmatpush1.bf16.msra.mxu0 0
    %1435 = vmatprep.mubr.bf16.mxu0 0
    %1436 = vmatmul.mubr.bf16.gmra.mrb[0].mxu0 %v1184
    %v1437 = vpop.f32.mrb[0].mxu0
    %v1438 = vadd.f32 %v1230, %v1437
    %v1439 = vpop.f32.mrb[0].mxu0
    %v1440 = vpop.f32.mrb[0].mxu0
    %v1441 = vpop.f32.mrb[0].mxu0
    %1442 = vdwg.mxu0
    %v1443 = vld [vmem:[%s8] sm:$0xf]
    %v1444 = vld [vmem:[%s8 + $0x4] sm:$0xf]
    %v1445 = vld [vmem:[%s8 + $0x8] sm:$0xf]
    %v1446 = vld [vmem:[%s8 + $0xc] sm:$0xf]
    %v1447 = vld [vmem:[%s8 + $0x10] sm:$0xf]
    %v1448 = vld [vmem:[%s8 + $0x14] sm:$0xf]
    %v1449 = vld [vmem:[%s8 + $0x18] sm:$0xf]
    %v1450 = vld [vmem:[%s8 + $0x1c] sm:$0xf]
    %v1451 = vld [vmem:[%s8 + $0x20] sm:$0xf]
    %v1452 = vld [vmem:[%s8 + $0x24] sm:$0xf]
    %v1453 = vld [vmem:[%s8 + $0x28] sm:$0xf]
    %v1454 = vld [vmem:[%s8 + $0x2c] sm:$0xf]
    %v1455 = vld [vmem:[%s8 + $0x30] sm:$0xf]
    %v1456 = vld [vmem:[%s8 + $0x34] sm:$0xf]
    %v1457 = vld [vmem:[%s8 + $0x38] sm:$0xf]
    %v1458 = vld [vmem:[%s8 + $0x3c] sm:$0xf]
    %v1459 = vld [vmem:[%s10] sm:$0xff]
    %v1460 = vmul.f32 %v1397, 0.17677669
    %v1461 = vpack.c.bf16 %v1460, %v1460
    %v1462 = vpack.c.bf16 %v1399, %v1399
    %v1463 = vpack.c.bf16 %v1438, %v1438
    %vm1464 = vcmask 261120
    %v1466 = vsel %vm1464, %v1461, 0
    %v1469 = vsel %vm1464, %v1462, 0
    %1471 = vmatprep.subr.bf16.mxu0 0
    %1472 = vmatpush1.bf16.xpose.msra.mxu0 %v1469
    %1473 = vmatprep.subr.bf16.mxu0 0
    %1474 = vmatpush1.bf16.xpose.msra.mxu0 0
    %1475 = vmatprep.subr.bf16.mxu0 0
    %1476 = vmatpush1.bf16.xpose.msra.mxu0 0
    %1477 = vmatprep.subr.bf16.mxu0 0
    %1478 = vmatpush1.bf16.xpose.msra.mxu0 0
    %1479 = vmatprep.subr.bf16.mxu0 0
    %1480 = vmatpush1.bf16.xpose.msra.mxu0 0
    %1481 = vmatprep.subr.bf16.mxu0 0
    %1482 = vmatpush1.bf16.xpose.msra.mxu0 0
    %1483 = vmatprep.subr.bf16.mxu0 0
    %1484 = vmatpush1.bf16.xpose.msra.mxu0 0
    %1485 = vmatprep.subr.bf16.mxu0 0
    %1486 = vmatpush1.bf16.xpose.msra.mxu0 0
    %1487 = vmatprep.subr.bf16.mxu0 0
    %1488 = vmatpush1.bf16.xpose.msra.mxu0 0
    %1489 = vmatprep.subr.bf16.mxu0 0
    %1490 = vmatpush1.bf16.xpose.msra.mxu0 0
    %1491 = vmatprep.subr.bf16.mxu0 0
    %1492 = vmatpush1.bf16.xpose.msra.mxu0 0
    %1493 = vmatprep.subr.bf16.mxu0 0
    %1494 = vmatpush1.bf16.xpose.msra.mxu0 0
    %1495 = vmatprep.subr.bf16.mxu0 0
    %1496 = vmatpush1.bf16.xpose.msra.mxu0 0
    %1497 = vmatprep.subr.bf16.mxu0 0
    %1498 = vmatpush1.bf16.xpose.msra.mxu0 0
    %1499 = vmatprep.subr.bf16.mxu0 0
    %1500 = vmatpush1.bf16.xpose.msra.mxu0 0
    %1501 = vmatprep.subr.bf16.mxu0 0
    %1502 = vmatpush1.bf16.xpose.msra.mxu0 0
    %1503 = vmatprep.mubr.bf16.mxu0 0
    %1504 = vmatmul.mubr.bf16.gmra.mrb[0].mxu0 %v1466
    %v1505 = vpop.f32.mrb[0].mxu0
    %v1506 = vadd.f32 %v1459, %v1505
    %v1507 = vpop.f32.mrb[0].mxu0
    %v1508 = vpop.f32.mrb[0].mxu0
    %v1509 = vpop.f32.mrb[0].mxu0
    %1510 = vdwg.mxu0
    %vm1511 = vcmask 64512
    %v1512 = vsel %vm1511, %v1506, -inf
    %1513 = vmax.xlane.f32.xlu0 %v1512
    %v1514 = vpop.xlane.xlu0 %1513
    %v1515 = vsub.f32 %v1506, %v1514
    %v1516 = vmul.f32 %v1515, 1.442695
    %v1517 = vpow.pop %v1516
    %v1518 = vsel %vm1511, %v1517, 0.0
    %1519 = vadd.xlane.f32.xlu0 %v1518
    %v1520 = vpop.xlane.xlu0 %1519
    %v1521 = vrcp.pop %v1520
    %v1522 = vmul.f32 %v1517, %v1521
    %v1523 = vpack.c.bf16 %v1522, %v1522
    %v1525 = vsel %vm1511, %v1523, 0
    %vm1527 = vcmask 1043456
    %v1529 = vsel %vm1527, %v1463, 0
    %1531 = vmatprep.subr.bf16.mxu0 0
    %1532 = vmatpush1.bf16.msra.mxu0 %v1529
    %1533 = vmatprep.subr.bf16.mxu0 0
    %1534 = vmatpush1.bf16.msra.mxu0 0
    %1535 = vmatprep.subr.bf16.mxu0 0
    %1536 = vmatpush1.bf16.msra.mxu0 0
    %1537 = vmatprep.subr.bf16.mxu0 0
    %1538 = vmatpush1.bf16.msra.mxu0 0
    %1539 = vmatprep.subr.bf16.mxu0 0
    %1540 = vmatpush1.bf16.msra.mxu0 0
    %1541 = vmatprep.subr.bf16.mxu0 0
    %1542 = vmatpush1.bf16.msra.mxu0 0
    %1543 = vmatprep.subr.bf16.mxu0 0
    %1544 = vmatpush1.bf16.msra.mxu0 0
    %1545 = vmatprep.subr.bf16.mxu0 0
    %1546 = vmatpush1.bf16.msra.mxu0 0
    %1547 = vmatprep.subr.bf16.mxu0 0
    %1548 = vmatpush1.bf16.msra.mxu0 0
    %1549 = vmatprep.subr.bf16.mxu0 0
    %1550 = vmatpush1.bf16.msra.mxu0 0
    %1551 = vmatprep.subr.bf16.mxu0 0
    %1552 = vmatpush1.bf16.msra.mxu0 0
    %1553 = vmatprep.subr.bf16.mxu0 0
    %1554 = vmatpush1.bf16.msra.mxu0 0
    %1555 = vmatprep.subr.bf16.mxu0 0
    %1556 = vmatpush1.bf16.msra.mxu0 0
    %1557 = vmatprep.subr.bf16.mxu0 0
    %1558 = vmatpush1.bf16.msra.mxu0 0
    %1559 = vmatprep.subr.bf16.mxu0 0
    %1560 = vmatpush1.bf16.msra.mxu0 0
    %1561 = vmatprep.subr.bf16.mxu0 0
    %1562 = vmatpush1.bf16.msra.mxu0 0
    %1563 = vmatprep.mubr.bf16.mxu0 0
    %1564 = vmatmul.mubr.bf16.gmra.mrb[0].mxu0 %v1525
    %v1565 = vpop.f32.mrb[0].mxu0
    %v1566 = vadd.f32 0.0, %v1565
    %v1567 = vpop.f32.mrb[0].mxu0
    %v1568 = vpop.f32.mrb[0].mxu0
    %v1569 = vpop.f32.mrb[0].mxu0
    %1570 = vdwg.mxu0
    %v1571 = vpack.c.bf16 %v1566, %v1566
    %1573 = vrot.lane.b32.xlu0 %v1461, 96
    %v1574 = vpop.permute.xlu0 %1573
    %1576 = vrot.lane.b32.xlu0 %v1462, 96
    %v1577 = vpop.permute.xlu0 %1576
    %v1579 = vsel %vm1464, %v1574, 0
    %v1582 = vsel %vm1464, %v1577, 0
    %1584 = vmatprep.subr.bf16.mxu0 0
    %1585 = vmatpush1.bf16.xpose.msra.mxu0 %v1582
    %1586 = vmatprep.subr.bf16.mxu0 0
    %1587 = vmatpush1.bf16.xpose.msra.mxu0 0
    %1588 = vmatprep.subr.bf16.mxu0 0
    %1589 = vmatpush1.bf16.xpose.msra.mxu0 0
    %1590 = vmatprep.subr.bf16.mxu0 0
    %1591 = vmatpush1.bf16.xpose.msra.mxu0 0
    %1592 = vmatprep.subr.bf16.mxu0 0
    %1593 = vmatpush1.bf16.xpose.msra.mxu0 0
    %1594 = vmatprep.subr.bf16.mxu0 0
    %1595 = vmatpush1.bf16.xpose.msra.mxu0 0
    %1596 = vmatprep.subr.bf16.mxu0 0
    %1597 = vmatpush1.bf16.xpose.msra.mxu0 0
    %1598 = vmatprep.subr.bf16.mxu0 0
    %1599 = vmatpush1.bf16.xpose.msra.mxu0 0
    %1600 = vmatprep.subr.bf16.mxu0 0
    %1601 = vmatpush1.bf16.xpose.msra.mxu0 0
    %1602 = vmatprep.subr.bf16.mxu0 0
    %1603 = vmatpush1.bf16.xpose.msra.mxu0 0
    %1604 = vmatprep.subr.bf16.mxu0 0
    %1605 = vmatpush1.bf16.xpose.msra.mxu0 0
    %1606 = vmatprep.subr.bf16.mxu0 0
    %1607 = vmatpush1.bf16.xpose.msra.mxu0 0
    %1608 = vmatprep.subr.bf16.mxu0 0
    %1609 = vmatpush1.bf16.xpose.msra.mxu0 0
    %1610 = vmatprep.subr.bf16.mxu0 0
    %1611 = vmatpush1.bf16.xpose.msra.mxu0 0
    %1612 = vmatprep.subr.bf16.mxu0 0
    %1613 = vmatpush1.bf16.xpose.msra.mxu0 0
    %1614 = vmatprep.subr.bf16.mxu0 0
    %1615 = vmatpush1.bf16.xpose.msra.mxu0 0
    %1616 = vmatprep.mubr.bf16.mxu0 0
    %1617 = vmatmul.mubr.bf16.gmra.mrb[0].mxu0 %v1579
    %v1618 = vpop.f32.mrb[0].mxu0
    %v1619 = vadd.f32 %v1459, %v1618
    %v1620 = vpop.f32.mrb[0].mxu0
    %v1621 = vpop.f32.mrb[0].mxu0
    %v1622 = vpop.f32.mrb[0].mxu0
    %1623 = vdwg.mxu0
    %v1624 = vsel %vm1511, %v1619, -inf
    %1625 = vmax.xlane.f32.xlu0 %v1624
    %v1626 = vpop.xlane.xlu0 %1625
    %v1627 = vsub.f32 %v1619, %v1626
    %v1628 = vmul.f32 %v1627, 1.442695
    %v1629 = vpow.pop %v1628
    %v1630 = vsel %vm1511, %v1629, 0.0
    %1631 = vadd.xlane.f32.xlu0 %v1630
    %v1632 = vpop.xlane.xlu0 %1631
    %v1633 = vrcp.pop %v1632
    %v1634 = vmul.f32 %v1629, %v1633
    %v1635 = vpack.c.bf16 %v1634, %v1634
    %1637 = vrot.lane.b32.xlu0 %v1463, 96
    %v1638 = vpop.permute.xlu0 %1637
    %v1640 = vsel %vm1511, %v1635, 0
    %v1643 = vsel %vm1527, %v1638, 0
    %1645 = vmatprep.subr.bf16.mxu0 0
    %1646 = vmatpush1.bf16.msra.mxu0 %v1643
    %1647 = vmatprep.subr.bf16.mxu0 0
    %1648 = vmatpush1.bf16.msra.mxu0 0
    %1649 = vmatprep.subr.bf16.mxu0 0
    %1650 = vmatpush1.bf16.msra.mxu0 0
    %1651 = vmatprep.subr.bf16.mxu0 0
    %1652 = vmatpush1.bf16.msra.mxu0 0
    %1653 = vmatprep.subr.bf16.mxu0 0
    %1654 = vmatpush1.bf16.msra.mxu0 0
    %1655 = vmatprep.subr.bf16.mxu0 0
    %1656 = vmatpush1.bf16.msra.mxu0 0
    %1657 = vmatprep.subr.bf16.mxu0 0
    %1658 = vmatpush1.bf16.msra.mxu0 0
    %1659 = vmatprep.subr.bf16.mxu0 0
    %1660 = vmatpush1.bf16.msra.mxu0 0
    %1661 = vmatprep.subr.bf16.mxu0 0
    %1662 = vmatpush1.bf16.msra.mxu0 0
    %1663 = vmatprep.subr.bf16.mxu0 0
    %1664 = vmatpush1.bf16.msra.mxu0 0
    %1665 = vmatprep.subr.bf16.mxu0 0
    %1666 = vmatpush1.bf16.msra.mxu0 0
    %1667 = vmatprep.subr.bf16.mxu0 0
    %1668 = vmatpush1.bf16.msra.mxu0 0
    %1669 = vmatprep.subr.bf16.mxu0 0
    %1670 = vmatpush1.bf16.msra.mxu0 0
    %1671 = vmatprep.subr.bf16.mxu0 0
    %1672 = vmatpush1.bf16.msra.mxu0 0
    %1673 = vmatprep.subr.bf16.mxu0 0
    %1674 = vmatpush1.bf16.msra.mxu0 0
    %1675 = vmatprep.subr.bf16.mxu0 0
    %1676 = vmatpush1.bf16.msra.mxu0 0
    %1677 = vmatprep.mubr.bf16.mxu0 0
    %1678 = vmatmul.mubr.bf16.gmra.mrb[0].mxu0 %v1640
    %v1679 = vpop.f32.mrb[0].mxu0
    %v1680 = vadd.f32 0.0, %v1679
    %v1681 = vpop.f32.mrb[0].mxu0
    %v1682 = vpop.f32.mrb[0].mxu0
    %v1683 = vpop.f32.mrb[0].mxu0
    %1684 = vdwg.mxu0
    %v1685 = vpack.c.bf16 %v1680, %v1680
    %v1690 = vunpack.c.l.b16 %v1447
    %v1691 = vunpack.c.l.b16 %v1448
    %v1692 = vunpack.c.l.b16 %v1449
    %v1693 = vunpack.c.l.b16 %v1450
    %v1694 = vpack.c.b16 %v1691, %v1690
    %v1695 = vpack.c.b16 %v1693, %v1692
    %v1699 = vsel %vm1464, %v1685, 0
    %1701 = vmatprep.subr.bf16.mxu0 0
    %1702 = vmatpush1.bf16.msra.mxu0 %v1694
    %1703 = vmatprep.subr.bf16.mxu0 0
    %1704 = vmatpush1.bf16.msra.mxu0 %v1695
    %1705 = vmatprep.subr.bf16.mxu0 0
    %1706 = vmatpush1.bf16.msra.mxu0 0
    %1707 = vmatprep.subr.bf16.mxu0 0
    %1708 = vmatpush1.bf16.msra.mxu0 0
    %1709 = vmatprep.subr.bf16.mxu0 0
    %1710 = vmatpush1.bf16.msra.mxu0 0
    %1711 = vmatprep.subr.bf16.mxu0 0
    %1712 = vmatpush1.bf16.msra.mxu0 0
    %1713 = vmatprep.subr.bf16.mxu0 0
    %1714 = vmatpush1.bf16.msra.mxu0 0
    %1715 = vmatprep.subr.bf16.mxu0 0
    %1716 = vmatpush1.bf16.msra.mxu0 0
    %1717 = vmatprep.subr.bf16.mxu0 0
    %1718 = vmatpush1.bf16.msra.mxu0 0
    %1719 = vmatprep.subr.bf16.mxu0 0
    %1720 = vmatpush1.bf16.msra.mxu0 0
    %1721 = vmatprep.subr.bf16.mxu0 0
    %1722 = vmatpush1.bf16.msra.mxu0 0
    %1723 = vmatprep.subr.bf16.mxu0 0
    %1724 = vmatpush1.bf16.msra.mxu0 0
    %1725 = vmatprep.subr.bf16.mxu0 0
    %1726 = vmatpush1.bf16.msra.mxu0 0
    %1727 = vmatprep.subr.bf16.mxu0 0
    %1728 = vmatpush1.bf16.msra.mxu0 0
    %1729 = vmatprep.subr.bf16.mxu0 0
    %1730 = vmatpush1.bf16.msra.mxu0 0
    %1731 = vmatprep.subr.bf16.mxu0 0
    %1732 = vmatpush1.bf16.msra.mxu0 0
    %1733 = vmatprep.mubr.bf16.mxu0 0
    %1734 = vmatmul.mubr.bf16.gmra.mrb[0].mxu0 %v1699
    %v1735 = vpop.f32.mrb[0].mxu0
    %v1736 = vadd.f32 0.0, %v1735
    %v1737 = vpop.f32.mrb[0].mxu0
    %v1738 = vpop.f32.mrb[0].mxu0
    %v1739 = vpop.f32.mrb[0].mxu0
    %1740 = vdwg.mxu0
    %v1745 = vunpack.c.l.b16 %v1443
    %v1746 = vunpack.c.l.b16 %v1444
    %v1747 = vunpack.c.l.b16 %v1445
    %v1748 = vunpack.c.l.b16 %v1446
    %v1749 = vpack.c.b16 %v1746, %v1745
    %v1750 = vpack.c.b16 %v1748, %v1747
    %v1754 = vsel %vm1464, %v1571, 0
    %1756 = vmatprep.subr.bf16.mxu0 0
    %1757 = vmatpush1.bf16.msra.mxu0 %v1749
    %1758 = vmatprep.subr.bf16.mxu0 0
    %1759 = vmatpush1.bf16.msra.mxu0 %v1750
    %1760 = vmatprep.subr.bf16.mxu0 0
    %1761 = vmatpush1.bf16.msra.mxu0 0
    %1762 = vmatprep.subr.bf16.mxu0 0
    %1763 = vmatpush1.bf16.msra.mxu0 0
    %1764 = vmatprep.subr.bf16.mxu0 0
    %1765 = vmatpush1.bf16.msra.mxu0 0
    %1766 = vmatprep.subr.bf16.mxu0 0
    %1767 = vmatpush1.bf16.msra.mxu0 0
    %1768 = vmatprep.subr.bf16.mxu0 0
    %1769 = vmatpush1.bf16.msra.mxu0 0
    %1770 = vmatprep.subr.bf16.mxu0 0
    %1771 = vmatpush1.bf16.msra.mxu0 0
    %1772 = vmatprep.subr.bf16.mxu0 0
    %1773 = vmatpush1.bf16.msra.mxu0 0
    %1774 = vmatprep.subr.bf16.mxu0 0
    %1775 = vmatpush1.bf16.msra.mxu0 0
    %1776 = vmatprep.subr.bf16.mxu0 0
    %1777 = vmatpush1.bf16.msra.mxu0 0
    %1778 = vmatprep.subr.bf16.mxu0 0
    %1779 = vmatpush1.bf16.msra.mxu0 0
    %1780 = vmatprep.subr.bf16.mxu0 0
    %1781 = vmatpush1.bf16.msra.mxu0 0
    %1782 = vmatprep.subr.bf16.mxu0 0
    %1783 = vmatpush1.bf16.msra.mxu0 0
    %1784 = vmatprep.subr.bf16.mxu0 0
    %1785 = vmatpush1.bf16.msra.mxu0 0
    %1786 = vmatprep.subr.bf16.mxu0 0
    %1787 = vmatpush1.bf16.msra.mxu0 0
    %1788 = vmatprep.mubr.bf16.mxu0 0
    %1789 = vmatmul.mubr.bf16.gmra.mrb[0].mxu0 %v1754
    %v1790 = vpop.f32.mrb[0].mxu0
    %v1791 = vadd.f32 %v1736, %v1790
    %v1792 = vpop.f32.mrb[0].mxu0
    %v1793 = vpop.f32.mrb[0].mxu0
    %v1794 = vpop.f32.mrb[0].mxu0
    %1795 = vdwg.mxu0
    %1796 = vrot.lane.b32.xlu0 %v1461, 64
    %v1797 = vpop.permute.xlu0 %1796
    %1798 = vrot.lane.b32.xlu0 %v1462, 64
    %v1799 = vpop.permute.xlu0 %1798
    %v1801 = vsel %vm1464, %v1797, 0
    %v1804 = vsel %vm1464, %v1799, 0
    %1806 = vmatprep.subr.bf16.mxu0 0
    %1807 = vmatpush1.bf16.xpose.msra.mxu0 %v1804
    %1808 = vmatprep.subr.bf16.mxu0 0
    %1809 = vmatpush1.bf16.xpose.msra.mxu0 0
    %1810 = vmatprep.subr.bf16.mxu0 0
    %1811 = vmatpush1.bf16.xpose.msra.mxu0 0
    %1812 = vmatprep.subr.bf16.mxu0 0
    %1813 = vmatpush1.bf16.xpose.msra.mxu0 0
    %1814 = vmatprep.subr.bf16.mxu0 0
    %1815 = vmatpush1.bf16.xpose.msra.mxu0 0
    %1816 = vmatprep.subr.bf16.mxu0 0
    %1817 = vmatpush1.bf16.xpose.msra.mxu0 0
    %1818 = vmatprep.subr.bf16.mxu0 0
    %1819 = vmatpush1.bf16.xpose.msra.mxu0 0
    %1820 = vmatprep.subr.bf16.mxu0 0
    %1821 = vmatpush1.bf16.xpose.msra.mxu0 0
    %1822 = vmatprep.subr.bf16.mxu0 0
    %1823 = vmatpush1.bf16.xpose.msra.mxu0 0
    %1824 = vmatprep.subr.bf16.mxu0 0
    %1825 = vmatpush1.bf16.xpose.msra.mxu0 0
    %1826 = vmatprep.subr.bf16.mxu0 0
    %1827 = vmatpush1.bf16.xpose.msra.mxu0 0
    %1828 = vmatprep.subr.bf16.mxu0 0
    %1829 = vmatpush1.bf16.xpose.msra.mxu0 0
    %1830 = vmatprep.subr.bf16.mxu0 0
    %1831 = vmatpush1.bf16.xpose.msra.mxu0 0
    %1832 = vmatprep.subr.bf16.mxu0 0
    %1833 = vmatpush1.bf16.xpose.msra.mxu0 0
    %1834 = vmatprep.subr.bf16.mxu0 0
    %1835 = vmatpush1.bf16.xpose.msra.mxu0 0
    %1836 = vmatprep.subr.bf16.mxu0 0
    %1837 = vmatpush1.bf16.xpose.msra.mxu0 0
    %1838 = vmatprep.mubr.bf16.mxu0 0
    %1839 = vmatmul.mubr.bf16.gmra.mrb[0].mxu0 %v1801
    %v1840 = vpop.f32.mrb[0].mxu0
    %v1841 = vadd.f32 %v1459, %v1840
    %v1842 = vpop.f32.mrb[0].mxu0
    %v1843 = vpop.f32.mrb[0].mxu0
    %v1844 = vpop.f32.mrb[0].mxu0
    %1845 = vdwg.mxu0
    %v1846 = vsel %vm1511, %v1841, -inf
    %1847 = vmax.xlane.f32.xlu0 %v1846
    %v1848 = vpop.xlane.xlu0 %1847
    %v1849 = vsub.f32 %v1841, %v1848
    %v1850 = vmul.f32 %v1849, 1.442695
    %v1851 = vpow.pop %v1850
    %v1852 = vsel %vm1511, %v1851, 0.0
    %1853 = vadd.xlane.f32.xlu0 %v1852
    %v1854 = vpop.xlane.xlu0 %1853
    %v1855 = vrcp.pop %v1854
    %v1856 = vmul.f32 %v1851, %v1855
    %v1857 = vpack.c.bf16 %v1856, %v1856
    %1858 = vrot.lane.b32.xlu0 %v1463, 64
    %v1859 = vpop.permute.xlu0 %1858
    %v1861 = vsel %vm1511, %v1857, 0
    %v1864 = vsel %vm1527, %v1859, 0
    %1866 = vmatprep.subr.bf16.mxu0 0
    %1867 = vmatpush1.bf16.msra.mxu0 %v1864
    %1868 = vmatprep.subr.bf16.mxu0 0
    %1869 = vmatpush1.bf16.msra.mxu0 0
    %1870 = vmatprep.subr.bf16.mxu0 0
    %1871 = vmatpush1.bf16.msra.mxu0 0
    %1872 = vmatprep.subr.bf16.mxu0 0
    %1873 = vmatpush1.bf16.msra.mxu0 0
    %1874 = vmatprep.subr.bf16.mxu0 0
    %1875 = vmatpush1.bf16.msra.mxu0 0
    %1876 = vmatprep.subr.bf16.mxu0 0
    %1877 = vmatpush1.bf16.msra.mxu0 0
    %1878 = vmatprep.subr.bf16.mxu0 0
    %1879 = vmatpush1.bf16.msra.mxu0 0
    %1880 = vmatprep.subr.bf16.mxu0 0
    %1881 = vmatpush1.bf16.msra.mxu0 0
    %1882 = vmatprep.subr.bf16.mxu0 0
    %1883 = vmatpush1.bf16.msra.mxu0 0
    %1884 = vmatprep.subr.bf16.mxu0 0
    %1885 = vmatpush1.bf16.msra.mxu0 0
    %1886 = vmatprep.subr.bf16.mxu0 0
    %1887 = vmatpush1.bf16.msra.mxu0 0
    %1888 = vmatprep.subr.bf16.mxu0 0
    %1889 = vmatpush1.bf16.msra.mxu0 0
    %1890 = vmatprep.subr.bf16.mxu0 0
    %1891 = vmatpush1.bf16.msra.mxu0 0
    %1892 = vmatprep.subr.bf16.mxu0 0
    %1893 = vmatpush1.bf16.msra.mxu0 0
    %1894 = vmatprep.subr.bf16.mxu0 0
    %1895 = vmatpush1.bf16.msra.mxu0 0
    %1896 = vmatprep.subr.bf16.mxu0 0
    %1897 = vmatpush1.bf16.msra.mxu0 0
    %1898 = vmatprep.mubr.bf16.mxu0 0
    %1899 = vmatmul.mubr.bf16.gmra.mrb[0].mxu0 %v1861
    %v1900 = vpop.f32.mrb[0].mxu0
    %v1901 = vadd.f32 0.0, %v1900
    %v1902 = vpop.f32.mrb[0].mxu0
    %v1903 = vpop.f32.mrb[0].mxu0
    %v1904 = vpop.f32.mrb[0].mxu0
    %1905 = vdwg.mxu0
    %v1906 = vpack.c.bf16 %v1901, %v1901
    %v1911 = vunpack.c.l.b16 %v1451
    %v1912 = vunpack.c.l.b16 %v1452
    %v1913 = vunpack.c.l.b16 %v1453
    %v1914 = vunpack.c.l.b16 %v1454
    %v1915 = vpack.c.b16 %v1912, %v1911
    %v1916 = vpack.c.b16 %v1914, %v1913
    %v1920 = vsel %vm1464, %v1906, 0
    %1922 = vmatprep.subr.bf16.mxu0 0
    %1923 = vmatpush1.bf16.msra.mxu0 %v1915
    %1924 = vmatprep.subr.bf16.mxu0 0
    %1925 = vmatpush1.bf16.msra.mxu0 %v1916
    %1926 = vmatprep.subr.bf16.mxu0 0
    %1927 = vmatpush1.bf16.msra.mxu0 0
    %1928 = vmatprep.subr.bf16.mxu0 0
    %1929 = vmatpush1.bf16.msra.mxu0 0
    %1930 = vmatprep.subr.bf16.mxu0 0
    %1931 = vmatpush1.bf16.msra.mxu0 0
    %1932 = vmatprep.subr.bf16.mxu0 0
    %1933 = vmatpush1.bf16.msra.mxu0 0
    %1934 = vmatprep.subr.bf16.mxu0 0
    %1935 = vmatpush1.bf16.msra.mxu0 0
    %1936 = vmatprep.subr.bf16.mxu0 0
    %1937 = vmatpush1.bf16.msra.mxu0 0
    %1938 = vmatprep.subr.bf16.mxu0 0
    %1939 = vmatpush1.bf16.msra.mxu0 0
    %1940 = vmatprep.subr.bf16.mxu0 0
    %1941 = vmatpush1.bf16.msra.mxu0 0
    %1942 = vmatprep.subr.bf16.mxu0 0
    %1943 = vmatpush1.bf16.msra.mxu0 0
    %1944 = vmatprep.subr.bf16.mxu0 0
    %1945 = vmatpush1.bf16.msra.mxu0 0
    %1946 = vmatprep.subr.bf16.mxu0 0
    %1947 = vmatpush1.bf16.msra.mxu0 0
    %1948 = vmatprep.subr.bf16.mxu0 0
    %1949 = vmatpush1.bf16.msra.mxu0 0
    %1950 = vmatprep.subr.bf16.mxu0 0
    %1951 = vmatpush1.bf16.msra.mxu0 0
    %1952 = vmatprep.subr.bf16.mxu0 0
    %1953 = vmatpush1.bf16.msra.mxu0 0
    %1954 = vmatprep.mubr.bf16.mxu0 0
    %1955 = vmatmul.mubr.bf16.gmra.mrb[0].mxu0 %v1920
    %v1956 = vpop.f32.mrb[0].mxu0
    %v1957 = vadd.f32 0.0, %v1956
    %v1958 = vpop.f32.mrb[0].mxu0
    %v1959 = vpop.f32.mrb[0].mxu0
    %v1960 = vpop.f32.mrb[0].mxu0
    %1961 = vdwg.mxu0
    %v1962 = vadd.f32 %v1791, %v1957
    %1963 = vrot.lane.b32.xlu0 %v1461, 32
    %v1964 = vpop.permute.xlu0 %1963
    %1965 = vrot.lane.b32.xlu0 %v1462, 32
    %v1966 = vpop.permute.xlu0 %1965
    %v1968 = vsel %vm1464, %v1964, 0
    %v1971 = vsel %vm1464, %v1966, 0
    %1973 = vmatprep.subr.bf16.mxu0 0
    %1974 = vmatpush1.bf16.xpose.msra.mxu0 %v1971
    %1975 = vmatprep.subr.bf16.mxu0 0
    %1976 = vmatpush1.bf16.xpose.msra.mxu0 0
    %1977 = vmatprep.subr.bf16.mxu0 0
    %1978 = vmatpush1.bf16.xpose.msra.mxu0 0
    %1979 = vmatprep.subr.bf16.mxu0 0
    %1980 = vmatpush1.bf16.xpose.msra.mxu0 0
    %1981 = vmatprep.subr.bf16.mxu0 0
    %1982 = vmatpush1.bf16.xpose.msra.mxu0 0
    %1983 = vmatprep.subr.bf16.mxu0 0
    %1984 = vmatpush1.bf16.xpose.msra.mxu0 0
    %1985 = vmatprep.subr.bf16.mxu0 0
    %1986 = vmatpush1.bf16.xpose.msra.mxu0 0
    %1987 = vmatprep.subr.bf16.mxu0 0
    %1988 = vmatpush1.bf16.xpose.msra.mxu0 0
    %1989 = vmatprep.subr.bf16.mxu0 0
    %1990 = vmatpush1.bf16.xpose.msra.mxu0 0
    %1991 = vmatprep.subr.bf16.mxu0 0
    %1992 = vmatpush1.bf16.xpose.msra.mxu0 0
    %1993 = vmatprep.subr.bf16.mxu0 0
    %1994 = vmatpush1.bf16.xpose.msra.mxu0 0
    %1995 = vmatprep.subr.bf16.mxu0 0
    %1996 = vmatpush1.bf16.xpose.msra.mxu0 0
    %1997 = vmatprep.subr.bf16.mxu0 0
    %1998 = vmatpush1.bf16.xpose.msra.mxu0 0
    %1999 = vmatprep.subr.bf16.mxu0 0
    %2000 = vmatpush1.bf16.xpose.msra.mxu0 0
    %2001 = vmatprep.subr.bf16.mxu0 0
    %2002 = vmatpush1.bf16.xpose.msra.mxu0 0
    %2003 = vmatprep.subr.bf16.mxu0 0
    %2004 = vmatpush1.bf16.xpose.msra.mxu0 0
    %2005 = vmatprep.mubr.bf16.mxu0 0
    %2006 = vmatmul.mubr.bf16.gmra.mrb[0].mxu0 %v1968
    %v2007 = vpop.f32.mrb[0].mxu0
    %v2008 = vadd.f32 %v1459, %v2007
    %v2009 = vpop.f32.mrb[0].mxu0
    %v2010 = vpop.f32.mrb[0].mxu0
    %v2011 = vpop.f32.mrb[0].mxu0
    %2012 = vdwg.mxu0
    %v2013 = vsel %vm1511, %v2008, -inf
    %2014 = vmax.xlane.f32.xlu0 %v2013
    %v2015 = vpop.xlane.xlu0 %2014
    %v2016 = vsub.f32 %v2008, %v2015
    %v2017 = vmul.f32 %v2016, 1.442695
    %v2018 = vpow.pop %v2017
    %v2019 = vsel %vm1511, %v2018, 0.0
    %2020 = vadd.xlane.f32.xlu0 %v2019
    %v2021 = vpop.xlane.xlu0 %2020
    %v2022 = vrcp.pop %v2021
    %v2023 = vmul.f32 %v2018, %v2022
    %v2024 = vpack.c.bf16 %v2023, %v2023
    %2025 = vrot.lane.b32.xlu0 %v1463, 32
    %v2026 = vpop.permute.xlu0 %2025
    %v2028 = vsel %vm1511, %v2024, 0
    %v2031 = vsel %vm1527, %v2026, 0
    %2033 = vmatprep.subr.bf16.mxu0 0
    %2034 = vmatpush1.bf16.msra.mxu0 %v2031
    %2035 = vmatprep.subr.bf16.mxu0 0
    %2036 = vmatpush1.bf16.msra.mxu0 0
    %2037 = vmatprep.subr.bf16.mxu0 0
    %2038 = vmatpush1.bf16.msra.mxu0 0
    %2039 = vmatprep.subr.bf16.mxu0 0
    %2040 = vmatpush1.bf16.msra.mxu0 0
    %2041 = vmatprep.subr.bf16.mxu0 0
    %2042 = vmatpush1.bf16.msra.mxu0 0
    %2043 = vmatprep.subr.bf16.mxu0 0
    %2044 = vmatpush1.bf16.msra.mxu0 0
    %2045 = vmatprep.subr.bf16.mxu0 0
    %2046 = vmatpush1.bf16.msra.mxu0 0
    %2047 = vmatprep.subr.bf16.mxu0 0
    %2048 = vmatpush1.bf16.msra.mxu0 0
    %2049 = vmatprep.subr.bf16.mxu0 0
    %2050 = vmatpush1.bf16.msra.mxu0 0
    %2051 = vmatprep.subr.bf16.mxu0 0
    %2052 = vmatpush1.bf16.msra.mxu0 0
    %2053 = vmatprep.subr.bf16.mxu0 0
    %2054 = vmatpush1.bf16.msra.mxu0 0
    %2055 = vmatprep.subr.bf16.mxu0 0
    %2056 = vmatpush1.bf16.msra.mxu0 0
    %2057 = vmatprep.subr.bf16.mxu0 0
    %2058 = vmatpush1.bf16.msra.mxu0 0
    %2059 = vmatprep.subr.bf16.mxu0 0
    %2060 = vmatpush1.bf16.msra.mxu0 0
    %2061 = vmatprep.subr.bf16.mxu0 0
    %2062 = vmatpush1.bf16.msra.mxu0 0
    %2063 = vmatprep.subr.bf16.mxu0 0
    %2064 = vmatpush1.bf16.msra.mxu0 0
    %2065 = vmatprep.mubr.bf16.mxu0 0
    %2066 = vmatmul.mubr.bf16.gmra.mrb[0].mxu0 %v2028
    %v2067 = vpop.f32.mrb[0].mxu0
    %v2068 = vadd.f32 0.0, %v2067
    %v2069 = vpop.f32.mrb[0].mxu0
    %v2070 = vpop.f32.mrb[0].mxu0
    %v2071 = vpop.f32.mrb[0].mxu0
    %2072 = vdwg.mxu0
    %v2073 = vpack.c.bf16 %v2068, %v2068
    %v2078 = vunpack.c.l.b16 %v1455
    %v2079 = vunpack.c.l.b16 %v1456
    %v2080 = vunpack.c.l.b16 %v1457
    %v2081 = vunpack.c.l.b16 %v1458
    %v2082 = vpack.c.b16 %v2079, %v2078
    %v2083 = vpack.c.b16 %v2081, %v2080
    %v2087 = vsel %vm1464, %v2073, 0
    %2089 = vmatprep.subr.bf16.mxu0 0
    %2090 = vmatpush1.bf16.msra.mxu0 %v2082
    %2091 = vmatprep.subr.bf16.mxu0 0
    %2092 = vmatpush1.bf16.msra.mxu0 %v2083
    %2093 = vmatprep.subr.bf16.mxu0 0
    %2094 = vmatpush1.bf16.msra.mxu0 0
    %2095 = vmatprep.subr.bf16.mxu0 0
    %2096 = vmatpush1.bf16.msra.mxu0 0
    %2097 = vmatprep.subr.bf16.mxu0 0
    %2098 = vmatpush1.bf16.msra.mxu0 0
    %2099 = vmatprep.subr.bf16.mxu0 0
    %2100 = vmatpush1.bf16.msra.mxu0 0
    %2101 = vmatprep.subr.bf16.mxu0 0
    %2102 = vmatpush1.bf16.msra.mxu0 0
    %2103 = vmatprep.subr.bf16.mxu0 0
    %2104 = vmatpush1.bf16.msra.mxu0 0
    %2105 = vmatprep.subr.bf16.mxu0 0
    %2106 = vmatpush1.bf16.msra.mxu0 0
    %2107 = vmatprep.subr.bf16.mxu0 0
    %2108 = vmatpush1.bf16.msra.mxu0 0
    %2109 = vmatprep.subr.bf16.mxu0 0
    %2110 = vmatpush1.bf16.msra.mxu0 0
    %2111 = vmatprep.subr.bf16.mxu0 0
    %2112 = vmatpush1.bf16.msra.mxu0 0
    %2113 = vmatprep.subr.bf16.mxu0 0
    %2114 = vmatpush1.bf16.msra.mxu0 0
    %2115 = vmatprep.subr.bf16.mxu0 0
    %2116 = vmatpush1.bf16.msra.mxu0 0
    %2117 = vmatprep.subr.bf16.mxu0 0
    %2118 = vmatpush1.bf16.msra.mxu0 0
    %2119 = vmatprep.subr.bf16.mxu0 0
    %2120 = vmatpush1.bf16.msra.mxu0 0
    %2121 = vmatprep.mubr.bf16.mxu0 0
    %2122 = vmatmul.mubr.bf16.gmra.mrb[0].mxu0 %v2087
    %v2123 = vpop.f32.mrb[0].mxu0
    %v2124 = vadd.f32 0.0, %v2123
    %v2125 = vpop.f32.mrb[0].mxu0
    %v2126 = vpop.f32.mrb[0].mxu0
    %v2127 = vpop.f32.mrb[0].mxu0
    %2128 = vdwg.mxu0
    %v2129 = vadd.f32 %v1962, %v2124
    %v2130 = vld [vmem:[%s9] sm:$0x1]
    %v2132 = vlaneseq
    %v2133 = vshrl.u32 %v2132, 7
    %v2134 = vsub.s32 0, %v2133
    %v2135 = vrot.slane %v2130, %v2134
    %v2137 = vadd.f32 %v2129, %v2135
    %v2138 = vld [vmem:[%s11] sm:$0x1]
    %v2139 = vpack.c.bf16 %v2137, %v2137
    %v2141 = vsel %vm1511, %v2138, 0
    %v2144 = vsel %vm1527, %v2139, 0
    %2146 = vmatprep.subr.bf16.mxu0 0
    %2147 = vmatpush1.bf16.msra.mxu0 %v2144
    %2148 = vmatprep.subr.bf16.mxu0 0
    %2149 = vmatpush1.bf16.msra.mxu0 0
    %2150 = vmatprep.subr.bf16.mxu0 0
    %2151 = vmatpush1.bf16.msra.mxu0 0
    %2152 = vmatprep.subr.bf16.mxu0 0
    %2153 = vmatpush1.bf16.msra.mxu0 0
    %2154 = vmatprep.subr.bf16.mxu0 0
    %2155 = vmatpush1.bf16.msra.mxu0 0
    %2156 = vmatprep.subr.bf16.mxu0 0
    %2157 = vmatpush1.bf16.msra.mxu0 0
    %2158 = vmatprep.subr.bf16.mxu0 0
    %2159 = vmatpush1.bf16.msra.mxu0 0
    %2160 = vmatprep.subr.bf16.mxu0 0
    %2161 = vmatpush1.bf16.msra.mxu0 0
    %2162 = vmatprep.subr.bf16.mxu0 0
    %2163 = vmatpush1.bf16.msra.mxu0 0
    %2164 = vmatprep.subr.bf16.mxu0 0
    %2165 = vmatpush1.bf16.msra.mxu0 0
    %2166 = vmatprep.subr.bf16.mxu0 0
    %2167 = vmatpush1.bf16.msra.mxu0 0
    %2168 = vmatprep.subr.bf16.mxu0 0
    %2169 = vmatpush1.bf16.msra.mxu0 0
    %2170 = vmatprep.subr.bf16.mxu0 0
    %2171 = vmatpush1.bf16.msra.mxu0 0
    %2172 = vmatprep.subr.bf16.mxu0 0
    %2173 = vmatpush1.bf16.msra.mxu0 0
    %2174 = vmatprep.subr.bf16.mxu0 0
    %2175 = vmatpush1.bf16.msra.mxu0 0
    %2176 = vmatprep.subr.bf16.mxu0 0
    %2177 = vmatpush1.bf16.msra.mxu0 0
    %2178 = vmatprep.mubr.bf16.mxu0 0
    %2179 = vmatmul.mubr.bf16.gmra.mrb[0].mxu0 %v2141
    %v2180 = vpop.f32.mrb[0].mxu0
    %v2181 = vadd.f32 0.0, %v2180
    %v2182 = vpop.f32.mrb[0].mxu0
    %v2183 = vpop.f32.mrb[0].mxu0
    %v2184 = vpop.f32.mrb[0].mxu0
    %2185 = vdwg.mxu0
    %s2186 = sld [smem:[#allocation2]]
    %s2187 = ssub.f32 1.0, %s2186
    %v2188 = vstv %s2187
    %v2189 = vmul.f32 %v2181, %v2188
    %v2190 = vpack.c.bf16 %v2189, %v2189
    %v2191 = vld [vmem:[%s13] sm:$0xf]
    %v2192 = vld [vmem:[%s13 + $0x4] sm:$0xf]
    %v2193 = vld [vmem:[%s13 + $0x8] sm:$0xf]
    %v2194 = vld [vmem:[%s13 + $0xc] sm:$0xf]
    %v2195 = vld [vmem:[%s13 + $0x10] sm:$0xf]
    %v2196 = vld [vmem:[%s13 + $0x14] sm:$0xf]
    %v2197 = vld [vmem:[%s13 + $0x18] sm:$0xf]
    %v2198 = vld [vmem:[%s13 + $0x1c] sm:$0xf]
    %v2199 = vld [vmem:[%s13 + $0x20] sm:$0xf]
    %v2200 = vld [vmem:[%s13 + $0x24] sm:$0xf]
    %v2201 = vld [vmem:[%s13 + $0x28] sm:$0xf]
    %v2202 = vld [vmem:[%s13 + $0x2c] sm:$0xf]
    %v2203 = vld [vmem:[%s13 + $0x30] sm:$0xf]
    %v2204 = vld [vmem:[%s13 + $0x34] sm:$0xf]
    %v2205 = vld [vmem:[%s13 + $0x38] sm:$0xf]
    %v2206 = vld [vmem:[%s13 + $0x3c] sm:$0xf]
    %v2207 = vld [vmem:[%s14] sm:$0x1]
    %v2209 = vlaneseq
    %v2210 = vshrl.u32 %v2209, 7
    %v2211 = vsub.s32 0, %v2210
    %v2212 = vrot.slane %v2207, %v2211
    %v2230 = vunpack.c.l.b16 %v2191
    %v2231 = vunpack.c.l.b16 %v2192
    %v2232 = vunpack.c.l.b16 %v2193
    %v2233 = vunpack.c.l.b16 %v2194
    %v2234 = vunpack.c.l.b16 %v2195
    %v2235 = vunpack.c.l.b16 %v2196
    %v2236 = vunpack.c.l.b16 %v2197
    %v2237 = vunpack.c.l.b16 %v2198
    %v2238 = vunpack.c.l.b16 %v2199
    %v2239 = vunpack.c.l.b16 %v2200
    %v2240 = vunpack.c.l.b16 %v2201
    %v2241 = vunpack.c.l.b16 %v2202
    %v2242 = vunpack.c.l.b16 %v2203
    %v2243 = vunpack.c.l.b16 %v2204
    %v2244 = vunpack.c.l.b16 %v2205
    %v2245 = vunpack.c.l.b16 %v2206
    %v2246 = vpack.c.b16 %v2231, %v2230
    %v2247 = vpack.c.b16 %v2233, %v2232
    %v2248 = vpack.c.b16 %v2235, %v2234
    %v2249 = vpack.c.b16 %v2237, %v2236
    %v2250 = vpack.c.b16 %v2239, %v2238
    %v2251 = vpack.c.b16 %v2241, %v2240
    %v2252 = vpack.c.b16 %v2243, %v2242
    %v2253 = vpack.c.b16 %v2245, %v2244
    %2262 = vmatprep.subr.bf16.mxu0 0
    %2263 = vmatpush1.bf16.msra.mxu0 %v2246
    %2264 = vmatprep.subr.bf16.mxu0 0
    %2265 = vmatpush1.bf16.msra.mxu0 %v2247
    %2266 = vmatprep.subr.bf16.mxu0 0
    %2267 = vmatpush1.bf16.msra.mxu0 %v2248
    %2268 = vmatprep.subr.bf16.mxu0 0
    %2269 = vmatpush1.bf16.msra.mxu0 %v2249
    %2270 = vmatprep.subr.bf16.mxu0 0
    %2271 = vmatpush1.bf16.msra.mxu0 %v2250
    %2272 = vmatprep.subr.bf16.mxu0 0
    %2273 = vmatpush1.bf16.msra.mxu0 %v2251
    %2274 = vmatprep.subr.bf16.mxu0 0
    %2275 = vmatpush1.bf16.msra.mxu0 %v2252
    %2276 = vmatprep.subr.bf16.mxu0 0
    %2277 = vmatpush1.bf16.msra.mxu0 %v2253
    %2278 = vmatprep.subr.bf16.mxu0 0
    %2279 = vmatpush1.bf16.msra.mxu0 0
    %2280 = vmatprep.subr.bf16.mxu0 0
    %2281 = vmatpush1.bf16.msra.mxu0 0
    %2282 = vmatprep.subr.bf16.mxu0 0
    %2283 = vmatpush1.bf16.msra.mxu0 0
    %2284 = vmatprep.subr.bf16.mxu0 0
    %2285 = vmatpush1.bf16.msra.mxu0 0
    %2286 = vmatprep.subr.bf16.mxu0 0
    %2287 = vmatpush1.bf16.msra.mxu0 0
    %2288 = vmatprep.subr.bf16.mxu0 0
    %2289 = vmatpush1.bf16.msra.mxu0 0
    %2290 = vmatprep.subr.bf16.mxu0 0
    %2291 = vmatpush1.bf16.msra.mxu0 0
    %2292 = vmatprep.subr.bf16.mxu0 0
    %2293 = vmatpush1.bf16.msra.mxu0 0
    %2294 = vmatprep.mubr.bf16.mxu0 0
    %2295 = vmatmul.mubr.bf16.gmra.mrb[0].mxu0 %v2190
    %v2296 = vpop.f32.mrb[0].mxu0
    %v2297 = vadd.f32 %v2212, %v2296
    %v2298 = vpop.f32.mrb[0].mxu0
    %v2299 = vpop.f32.mrb[0].mxu0
    %v2300 = vpop.f32.mrb[0].mxu0
    %2301 = vdwg.mxu0
    %v2302 = vadd.f32 %v2181, %v2297
    %v2303 = vpack.c.bf16 %v2302, %v2302
    %v2304 = vld [vmem:[%s15] sm:$0xff]
    %v2305 = vld [vmem:[%s15 + $0x8] sm:$0xff]
    %v2306 = vld [vmem:[%s15 + $0x10] sm:$0xff]
    %v2307 = vld [vmem:[%s15 + $0x18] sm:$0xff]
    %v2308 = vld [vmem:[%s15 + $0x20] sm:$0xff]
    %v2309 = vld [vmem:[%s15 + $0x28] sm:$0xff]
    %v2310 = vld [vmem:[%s15 + $0x30] sm:$0xff]
    %v2311 = vld [vmem:[%s15 + $0x38] sm:$0xff]
    %v2312 = vld [vmem:[%s15 + $0x40] sm:$0xff]
    %v2313 = vld [vmem:[%s15 + $0x48] sm:$0xff]
    %v2314 = vld [vmem:[%s15 + $0x50] sm:$0xff]
    %v2315 = vld [vmem:[%s15 + $0x58] sm:$0xff]
    %v2316 = vld [vmem:[%s15 + $0x60] sm:$0xff]
    %v2317 = vld [vmem:[%s15 + $0x68] sm:$0xff]
    %v2318 = vld [vmem:[%s15 + $0x70] sm:$0xff]
    %v2319 = vld [vmem:[%s15 + $0x78] sm:$0xff]
    %v2320 = vld [vmem:[%s16] sm:$0x3]
    %v2322 = vlaneseq
    %v2323 = vshrl.u32 %v2322, 7
    %v2324 = vsub.s32 0, %v2323
    %v2325 = vrot.slane %v2320, %v2324
    %v2326 = vlaneseq
    %v2327 = vshrl.u32 %v2326, 7
    %v2328 = vsub.s32 1, %v2327
    %v2329 = vrot.slane %v2320, %v2328
    %v2348 = vunpack.c.l.b16 %v2304
    %v2349 = vunpack.c.h.b16 %v2304
    %v2350 = vunpack.c.l.b16 %v2305
    %v2351 = vunpack.c.h.b16 %v2305
    %v2352 = vunpack.c.l.b16 %v2306
    %v2353 = vunpack.c.h.b16 %v2306
    %v2354 = vunpack.c.l.b16 %v2307
    %v2355 = vunpack.c.h.b16 %v2307
    %v2356 = vunpack.c.l.b16 %v2308
    %v2357 = vunpack.c.h.b16 %v2308
    %v2358 = vunpack.c.l.b16 %v2309
    %v2359 = vunpack.c.h.b16 %v2309
    %v2360 = vunpack.c.l.b16 %v2310
    %v2361 = vunpack.c.h.b16 %v2310
    %v2362 = vunpack.c.l.b16 %v2311
    %v2363 = vunpack.c.h.b16 %v2311
    %v2364 = vunpack.c.l.b16 %v2312
    %v2365 = vunpack.c.h.b16 %v2312
    %v2366 = vunpack.c.l.b16 %v2313
    %v2367 = vunpack.c.h.b16 %v2313
    %v2368 = vunpack.c.l.b16 %v2314
    %v2369 = vunpack.c.h.b16 %v2314
    %v2370 = vunpack.c.l.b16 %v2315
    %v2371 = vunpack.c.h.b16 %v2315
    %v2372 = vunpack.c.l.b16 %v2316
    %v2373 = vunpack.c.h.b16 %v2316
    %v2374 = vunpack.c.l.b16 %v2317
    %v2375 = vunpack.c.h.b16 %v2317
    %v2376 = vunpack.c.l.b16 %v2318
    %v2377 = vunpack.c.h.b16 %v2318
    %v2378 = vunpack.c.l.b16 %v2319
    %v2379 = vunpack.c.h.b16 %v2319
    %v2380 = vpack.c.b16 %v2350, %v2348
    %v2381 = vpack.c.b16 %v2351, %v2349
    %v2382 = vpack.c.b16 %v2354, %v2352
    %v2383 = vpack.c.b16 %v2355, %v2353
    %v2384 = vpack.c.b16 %v2358, %v2356
    %v2385 = vpack.c.b16 %v2359, %v2357
    %v2386 = vpack.c.b16 %v2362, %v2360
    %v2387 = vpack.c.b16 %v2363, %v2361
    %v2388 = vpack.c.b16 %v2366, %v2364
    %v2389 = vpack.c.b16 %v2367, %v2365
    %v2390 = vpack.c.b16 %v2370, %v2368
    %v2391 = vpack.c.b16 %v2371, %v2369
    %v2392 = vpack.c.b16 %v2374, %v2372
    %v2393 = vpack.c.b16 %v2375, %v2373
    %v2394 = vpack.c.b16 %v2378, %v2376
    %v2395 = vpack.c.b16 %v2379, %v2377
    %2412 = vmatprep.subr.bf16.mxu0 %v2381
    %2413 = vmatpush1.bf16.msra.mxu0 %v2380
    %2414 = vmatprep.subr.bf16.mxu0 %v2383
    %2415 = vmatpush1.bf16.msra.mxu0 %v2382
    %2416 = vmatprep.subr.bf16.mxu0 %v2385
    %2417 = vmatpush1.bf16.msra.mxu0 %v2384
    %2418 = vmatprep.subr.bf16.mxu0 %v2387
    %2419 = vmatpush1.bf16.msra.mxu0 %v2386
    %2420 = vmatprep.subr.bf16.mxu0 %v2389
    %2421 = vmatpush1.bf16.msra.mxu0 %v2388
    %2422 = vmatprep.subr.bf16.mxu0 %v2391
    %2423 = vmatpush1.bf16.msra.mxu0 %v2390
    %2424 = vmatprep.subr.bf16.mxu0 %v2393
    %2425 = vmatpush1.bf16.msra.mxu0 %v2392
    %2426 = vmatprep.subr.bf16.mxu0 %v2395
    %2427 = vmatpush1.bf16.msra.mxu0 %v2394
    %2428 = vmatprep.subr.bf16.mxu0 0
    %2429 = vmatpush1.bf16.msra.mxu0 0
    %2430 = vmatprep.subr.bf16.mxu0 0
    %2431 = vmatpush1.bf16.msra.mxu0 0
    %2432 = vmatprep.subr.bf16.mxu0 0
    %2433 = vmatpush1.bf16.msra.mxu0 0
    %2434 = vmatprep.subr.bf16.mxu0 0
    %2435 = vmatpush1.bf16.msra.mxu0 0
    %2436 = vmatprep.subr.bf16.mxu0 0
    %2437 = vmatpush1.bf16.msra.mxu0 0
    %2438 = vmatprep.subr.bf16.mxu0 0
    %2439 = vmatpush1.bf16.msra.mxu0 0
    %2440 = vmatprep.subr.bf16.mxu0 0
    %2441 = vmatpush1.bf16.msra.mxu0 0
    %2442 = vmatprep.subr.bf16.mxu0 0
    %2443 = vmatpush1.bf16.msra.mxu0 0
    %2444 = vmatprep.mubr.bf16.mxu0 0
    %2445 = vmatmul.mubr.bf16.gmra.mrb[0].mxu0 %v2303
    %v2446 = vpop.f32.mrb[0].mxu0
    %v2447 = vadd.f32 %v2325, %v2446
    %v2448 = vpop.f32.mrb[0].mxu0
    %v2449 = vadd.f32 %v2329, %v2448
    %v2450 = vpop.f32.mrb[0].mxu0
    %v2451 = vpop.f32.mrb[0].mxu0
    %2452 = vdwg.mxu0
    %v2453 = vmax.f32 %v2447, 0.0
    %v2454 = vmax.f32 %v2449, 0.0
    %v2455 = vpack.c.bf16 %v2453, %v2453
    %v2456 = vpack.c.bf16 %v2454, %v2454
    %v2457 = vld [vmem:[%s17] sm:$0xf]
    %v2458 = vld [vmem:[%s17 + $0x4] sm:$0xf]
    %v2459 = vld [vmem:[%s17 + $0x8] sm:$0xf]
    %v2460 = vld [vmem:[%s17 + $0xc] sm:$0xf]
    %v2461 = vld [vmem:[%s17 + $0x10] sm:$0xf]
    %v2462 = vld [vmem:[%s17 + $0x14] sm:$0xf]
    %v2463 = vld [vmem:[%s17 + $0x18] sm:$0xf]
    %v2464 = vld [vmem:[%s17 + $0x1c] sm:$0xf]
    %v2465 = vld [vmem:[%s17 + $0x20] sm:$0xf]
    %v2466 = vld [vmem:[%s17 + $0x24] sm:$0xf]
    %v2467 = vld [vmem:[%s17 + $0x28] sm:$0xf]
    %v2468 = vld [vmem:[%s17 + $0x2c] sm:$0xf]
    %v2469 = vld [vmem:[%s17 + $0x30] sm:$0xf]
    %v2470 = vld [vmem:[%s17 + $0x34] sm:$0xf]
    %v2471 = vld [vmem:[%s17 + $0x38] sm:$0xf]
    %v2472 = vld [vmem:[%s17 + $0x3c] sm:$0xf]
    %v2473 = vld [vmem:[%s17 + $0x40] sm:$0xf]
    %v2474 = vld [vmem:[%s17 + $0x44] sm:$0xf]
    %v2475 = vld [vmem:[%s17 + $0x48] sm:$0xf]
    %v2476 = vld [vmem:[%s17 + $0x4c] sm:$0xf]
    %v2477 = vld [vmem:[%s17 + $0x50] sm:$0xf]
    %v2478 = vld [vmem:[%s17 + $0x54] sm:$0xf]
    %v2479 = vld [vmem:[%s17 + $0x58] sm:$0xf]
    %v2480 = vld [vmem:[%s17 + $0x5c] sm:$0xf]
    %v2481 = vld [vmem:[%s17 + $0x60] sm:$0xf]
    %v2482 = vld [vmem:[%s17 + $0x64] sm:$0xf]
    %v2483 = vld [vmem:[%s17 + $0x68] sm:$0xf]
    %v2484 = vld [vmem:[%s17 + $0x6c] sm:$0xf]
    %v2485 = vld [vmem:[%s17 + $0x70] sm:$0xf]
    %v2486 = vld [vmem:[%s17 + $0x74] sm:$0xf]
    %v2487 = vld [vmem:[%s17 + $0x78] sm:$0xf]
    %v2488 = vld [vmem:[%s17 + $0x7c] sm:$0xf]
    %v2489 = vld [vmem:[%s18] sm:$0x1]
    %v2491 = vlaneseq
    %v2492 = vshrl.u32 %v2491, 7
    %v2493 = vsub.s32 0, %v2492
    %v2494 = vrot.slane %v2489, %v2493
    %v2528 = vunpack.c.l.b16 %v2457
    %v2529 = vunpack.c.l.b16 %v2458
    %v2530 = vunpack.c.l.b16 %v2459
    %v2531 = vunpack.c.l.b16 %v2460
    %v2532 = vunpack.c.l.b16 %v2461
    %v2533 = vunpack.c.l.b16 %v2462
    %v2534 = vunpack.c.l.b16 %v2463
    %v2535 = vunpack.c.l.b16 %v2464
    %v2536 = vunpack.c.l.b16 %v2465
    %v2537 = vunpack.c.l.b16 %v2466
    %v2538 = vunpack.c.l.b16 %v2467
    %v2539 = vunpack.c.l.b16 %v2468
    %v2540 = vunpack.c.l.b16 %v2469
    %v2541 = vunpack.c.l.b16 %v2470
    %v2542 = vunpack.c.l.b16 %v2471
    %v2543 = vunpack.c.l.b16 %v2472
    %v2544 = vunpack.c.l.b16 %v2473
    %v2545 = vunpack.c.l.b16 %v2474
    %v2546 = vunpack.c.l.b16 %v2475
    %v2547 = vunpack.c.l.b16 %v2476
    %v2548 = vunpack.c.l.b16 %v2477
    %v2549 = vunpack.c.l.b16 %v2478
    %v2550 = vunpack.c.l.b16 %v2479
    %v2551 = vunpack.c.l.b16 %v2480
    %v2552 = vunpack.c.l.b16 %v2481
    %v2553 = vunpack.c.l.b16 %v2482
    %v2554 = vunpack.c.l.b16 %v2483
    %v2555 = vunpack.c.l.b16 %v2484
    %v2556 = vunpack.c.l.b16 %v2485
    %v2557 = vunpack.c.l.b16 %v2486
    %v2558 = vunpack.c.l.b16 %v2487
    %v2559 = vunpack.c.l.b16 %v2488
    %v2560 = vpack.c.b16 %v2529, %v2528
    %v2561 = vpack.c.b16 %v2531, %v2530
    %v2562 = vpack.c.b16 %v2533, %v2532
    %v2563 = vpack.c.b16 %v2535, %v2534
    %v2564 = vpack.c.b16 %v2537, %v2536
    %v2565 = vpack.c.b16 %v2539, %v2538
    %v2566 = vpack.c.b16 %v2541, %v2540
    %v2567 = vpack.c.b16 %v2543, %v2542
    %v2568 = vpack.c.b16 %v2545, %v2544
    %v2569 = vpack.c.b16 %v2547, %v2546
    %v2570 = vpack.c.b16 %v2549, %v2548
    %v2571 = vpack.c.b16 %v2551, %v2550
    %v2572 = vpack.c.b16 %v2553, %v2552
    %v2573 = vpack.c.b16 %v2555, %v2554
    %v2574 = vpack.c.b16 %v2557, %v2556
    %v2575 = vpack.c.b16 %v2559, %v2558
    %2592 = vmatprep.subr.bf16.mxu0 0
    %2593 = vmatpush1.bf16.msra.mxu0 %v2560
    %2594 = vmatprep.subr.bf16.mxu0 0
    %2595 = vmatpush1.bf16.msra.mxu0 %v2561
    %2596 = vmatprep.subr.bf16.mxu0 0
    %2597 = vmatpush1.bf16.msra.mxu0 %v2562
    %2598 = vmatprep.subr.bf16.mxu0 0
    %2599 = vmatpush1.bf16.msra.mxu0 %v2563
    %2600 = vmatprep.subr.bf16.mxu0 0
    %2601 = vmatpush1.bf16.msra.mxu0 %v2564
    %2602 = vmatprep.subr.bf16.mxu0 0
    %2603 = vmatpush1.bf16.msra.mxu0 %v2565
    %2604 = vmatprep.subr.bf16.mxu0 0
    %2605 = vmatpush1.bf16.msra.mxu0 %v2566
    %2606 = vmatprep.subr.bf16.mxu0 0
    %2607 = vmatpush1.bf16.msra.mxu0 %v2567
    %2608 = vmatprep.subr.bf16.mxu0 0
    %2609 = vmatpush1.bf16.msra.mxu0 %v2568
    %2610 = vmatprep.subr.bf16.mxu0 0
    %2611 = vmatpush1.bf16.msra.mxu0 %v2569
    %2612 = vmatprep.subr.bf16.mxu0 0
    %2613 = vmatpush1.bf16.msra.mxu0 %v2570
    %2614 = vmatprep.subr.bf16.mxu0 0
    %2615 = vmatpush1.bf16.msra.mxu0 %v2571
    %2616 = vmatprep.subr.bf16.mxu0 0
    %2617 = vmatpush1.bf16.msra.mxu0 %v2572
    %2618 = vmatprep.subr.bf16.mxu0 0
    %2619 = vmatpush1.bf16.msra.mxu0 %v2573
    %2620 = vmatprep.subr.bf16.mxu0 0
    %2621 = vmatpush1.bf16.msra.mxu0 %v2574
    %2622 = vmatprep.subr.bf16.mxu0 0
    %2623 = vmatpush1.bf16.msra.mxu0 %v2575
    %2624 = vmatprep.mubr.bf16.mxu0 %v2456
    %2625 = vmatmul.mubr.bf16.gmra.mrb[0].mxu0 %v2455
    %v2626 = vpop.f32.mrb[0].mxu0
    %v2627 = vadd.f32 %v2494, %v2626
    %v2628 = vpop.f32.mrb[0].mxu0
    %v2629 = vpop.f32.mrb[0].mxu0
    %v2630 = vpop.f32.mrb[0].mxu0
    %2631 = vdwg.mxu0
    %2632 = vst [vmem:[#allocation3] sm:$0x3] %v2627
    // Predicated region
    $region78: #{fair_deepfake_detector_forward.1} parent=1 // pred_check
      _
    $region79: #{fair_deepfake_detector_forward.1} parent=1 // pred_check_branch
      %2634 = sbr.rel (0) target = $region81
    $region80: #{fair_deepfake_detector_forward.1} parent=1 // pred_region
      %s2636 = ssub.s32 32, 32
      %2637 = vsyncadd [#allocation4], %s2636
      %s2639 = sshll.u32 [#allocation3], 4
      %s2640 = int_to_ptr.vmem [resolvable:$true] %s2639
      %2642 = dma.vmem_to_hbm [thread:$0]  %s2640, 32, %s19, [#allocation4]
    $region81: #{fair_deepfake_detector_forward.1} parent=1 // pred_fallthru
      _
    // Predicated region
    $region82: #{fair_deepfake_detector_forward.1} parent=1 // pred_check
      _
    $region83: #{fair_deepfake_detector_forward.1} parent=1 // pred_check_branch
      %2644 = sbr.rel (0) target = $region85
    $region84: #{fair_deepfake_detector_forward.1} parent=1 // pred_region
      %2645 = dma.done [#allocation4], 32
    $region85: #{fair_deepfake_detector_forward.1} parent=1 // pred_fallthru
      _
    %2646 = vsyncpa [#allocation4], 1

</llo_original>
